<compile_context>
chip_gen: v7x
topology: tpu7x:2x2x1
jax: 0.10.0
libtpu: 0.0.40
codegen_flags: <defaults>
</compile_context>

<pallas_src>
import functools

import jax
import jax.numpy as jnp
from jax import lax
from jax.experimental import pallas as pl
from jax.experimental.pallas import tpu as pltpu

# ---------------- small synthetic config (lane-friendly toy shapes) ----------------
VOCAB = 256
HIDDEN = 128
N_HEADS = 4
N_KV_HEADS = 2
HEAD_DIM = 32
INTERMEDIATE = 256
N_LAYERS = 2
EPS = 1e-6
ROPE_THETA = 10000.0
T = 16  # flattened tokens (nanovllm uses [num_tokens, hidden], no batch dim)

Q_SIZE = N_HEADS * HEAD_DIM            # 128
KV_SIZE = N_KV_HEADS * HEAD_DIM        # 64
QKV_W = Q_SIZE + 2 * KV_SIZE           # 256
GROUP = N_HEADS // N_KV_HEADS
HALF = HEAD_DIM // 2
COMPUTE_DTYPE = jnp.bfloat16           # MXU input dtype (f32 accumulation)


# ---------------- shared in-kernel helpers ----------------

def _matT(x, w):
    """x @ w.T with w in torch (out, in) layout: bf16 MXU inputs, f32 accumulation."""
    return lax.dot_general(
        x.astype(COMPUTE_DTYPE), w,
        dimension_numbers=(((1,), (1,)), ((), ())),
        preferred_element_type=jnp.float32)


def _rmsnorm_f32(x, w):
    """RMSNorm fully in f32 (weight multiply before any down-cast)."""
    var = jnp.mean(x * x, axis=-1, keepdims=True)
    return x * lax.rsqrt(var + EPS) * w.astype(jnp.float32)


# ---------------- fused all-layers kernel (grid over layers) ----------------

def _llama_layers_kernel(x_ref, cos_ref, sina_ref, sinb_ref,
                         win_ref, wpost_ref, wqkv_ref, wo_ref, wgu_ref, wdn_ref,
                         wfin_ref, out_ref, h_sc, res_sc, *,
                         n_heads, n_kv_heads, head_dim, q_size, kv_size, inter):
    f32 = jnp.float32
    layer = pl.program_id(0)
    t = x_ref.shape[0]
    qkv_w = q_size + 2 * kv_size
    half = head_dim // 2
    group = n_heads // n_kv_heads

    # ---- layer 0: seed the VMEM-resident hidden / residual carry ----
    @pl.when(layer == 0)
    def _():
        h_sc[...] = x_ref[...].astype(f32)
        res_sc[...] = jnp.zeros_like(res_sc)

    # ---- residual add + input RMSNorm (f32) ----
    x = h_sc[...] + res_sc[...]
    hn = _rmsnorm_f32(x, win_ref[...])

    # ---- fused QKV projection ----
    qkv = _matT(hn, wqkv_ref[...])                       # (t, qkv_w) f32

    # ---- RoPE on the whole QKV slab via two XLU lane rolls ----
    # rot_l[L] = qkv[L + half]  (second half of each head at its first-half lanes)
    # rot_r[L] = qkv[L - half]  (first  half of each head at its second-half lanes)
    # sina/sinb are nonzero only on the respective half-lanes (and zero on V lanes,
    # where cos is 1), so out-of-head wrap values never contribute.  The attention
    # scale is folded into the Q-lane cos/sin tables.
    rot_l = pltpu.roll(qkv, qkv_w - half, 1)
    rot_r = pltpu.roll(qkv, half, 1)
    qkv = qkv * cos_ref[...] + rot_l * sina_ref[...] + rot_r * sinb_ref[...]

    # ---- causal GQA attention: in-kernel iota mask, f32 softmax stats ----
    row = lax.broadcasted_iota(jnp.int32, (t, t), 0)
    col = lax.broadcasted_iota(jnp.int32, (t, t), 1)
    neg = jnp.where(row >= col, 0.0, -1e30).astype(f32)  # additive causal mask

    head_outs = []
    for h in range(n_heads):
        j = h // group                                   # KV head of this query head
        q_h = qkv[:, h * head_dim:(h + 1) * head_dim]    # already scaled via tables
        k_h = qkv[:, q_size + j * head_dim:q_size + (j + 1) * head_dim]
        v_h = qkv[:, q_size + kv_size + j * head_dim:
                  q_size + kv_size + (j + 1) * head_dim]
        s = lax.dot_general(q_h.astype(COMPUTE_DTYPE), k_h.astype(COMPUTE_DTYPE),
                            dimension_numbers=(((1,), (1,)), ((), ())),
                            preferred_element_type=f32) + neg
        m = jnp.max(s, axis=-1, keepdims=True)
        p = jnp.exp(s - m)
        inv_l = pl.reciprocal(jnp.sum(p, axis=-1, keepdims=True))   # exact
        o = jnp.dot(p.astype(COMPUTE_DTYPE), v_h.astype(COMPUTE_DTYPE),
                    preferred_element_type=f32) * inv_l  # normalize O (head_dim-wide)
        head_outs.append(o)
    attn = jnp.concatenate(head_outs, axis=-1)           # (t, q_size), lane-dense

    # ---- o_proj + residual + post-attention RMSNorm ----
    x2 = _matT(attn, wo_ref[...]) + x
    res_sc[...] = x2
    hn2 = _rmsnorm_f32(x2, wpost_ref[...])

    # ---- gate_up -> SiLU*mul -> down (fused MLP) ----
    gu = _matT(hn2, wgu_ref[...])                        # (t, 2*inter) f32
    gate = gu[:, :inter]
    up = gu[:, inter:]
    h_new = _matT(gate * jax.nn.sigmoid(gate) * up, wdn_ref[...])
    h_sc[...] = h_new

    # ---- final RMSNorm fused into the last layer step ----
    @pl.when(layer == pl.num_programs(0) - 1)
    def _():
        out_ref[...] = _rmsnorm_f32(h_new + x2, wfin_ref[...]).astype(out_ref.dtype)


def llama_layers(x_emb, cos_t, sin_a, sin_b, lw, final_w):
    t, hd = x_emb.shape
    n_layers = lw["qkv"].shape[0]
    kernel = functools.partial(
        _llama_layers_kernel, n_heads=N_HEADS, n_kv_heads=N_KV_HEADS,
        head_dim=HEAD_DIM, q_size=Q_SIZE, kv_size=KV_SIZE, inter=INTERMEDIATE)

    def shared(shape):                 # constant over the layer grid (DMA'd once)
        return pl.BlockSpec(shape, lambda l: (0,) * len(shape))

    def per_layer(shape):              # (N_LAYERS, *shape) -> layer l's slice
        return pl.BlockSpec((None,) + shape, lambda l: (l,) + (0,) * len(shape))

    return pl.pallas_call(
        kernel,
        out_shape=jax.ShapeDtypeStruct((t, hd), jnp.float32),
        grid=(n_layers,),
        in_specs=[shared((t, hd)),
                  shared((t, QKV_W)), shared((t, QKV_W)), shared((t, QKV_W)),
                  per_layer((1, hd)), per_layer((1, hd)),
                  per_layer((QKV_W, hd)), per_layer((hd, Q_SIZE)),
                  per_layer((2 * INTERMEDIATE, hd)), per_layer((hd, INTERMEDIATE)),
                  shared((1, hd))],
        out_specs=shared((t, hd)),
        scratch_shapes=[pltpu.VMEM((t, hd), jnp.float32),   # hidden carry
                        pltpu.VMEM((t, hd), jnp.float32)],  # residual carry
        compiler_params=pltpu.CompilerParams(
            dimension_semantics=("arbitrary",)),
    )(x_emb, cos_t, sin_a, sin_b,
      lw["input_norm"], lw["post_norm"], lw["qkv"], lw["o_proj"],
      lw["gate_up"], lw["down"], final_w)


# ---------------- lm_head (vocab-tiled, 'parallel' grid) ----------------

def _lm_head_kernel(x_ref, w_ref, o_ref):
    o_ref[...] = lax.dot_general(
        x_ref[...].astype(COMPUTE_DTYPE), w_ref[...],
        dimension_numbers=(((1,), (1,)), ((), ())),
        preferred_element_type=jnp.float32).astype(o_ref.dtype)


@functools.partial(jax.jit, static_argnames=("tile_v",))
def compute_logits(hidden, lm_head_w, tile_v=256):
    # TODO(synk): for real vocab sizes use tile_v 512-2048 (VMEM-budgeted, halved
    #             on v7x) and add a K(hidden) grid axis with a f32 accumulator.
    t, hd = hidden.shape
    v = lm_head_w.shape[0]
    return pl.pallas_call(
        _lm_head_kernel,
        out_shape=jax.ShapeDtypeStruct((t, v), jnp.float32),
        grid=(pl.cdiv(v, tile_v),),
        in_specs=[pl.BlockSpec((t, hd), lambda j: (0, 0)),
                  pl.BlockSpec((tile_v, hd), lambda j: (j, 0))],
        out_specs=pl.BlockSpec((t, tile_v), lambda j: (0, j)),
        compiler_params=pltpu.CompilerParams(
            dimension_semantics=("parallel",)),
    )(hidden, lm_head_w)


# ---------------- parameters, RoPE tables & forward ----------------

def init_params(key):
    keys = jax.random.split(key, 8)

    def w(k, shape, scale=0.02):
        return (scale * jax.random.normal(k, shape, dtype=jnp.float32)
                ).astype(COMPUTE_DTYPE)       # bf16 weights, f32 MXU accumulation

    def norm_w(k):
        return 1.0 + 0.05 * jax.random.normal(k, (N_LAYERS, 1, HIDDEN), jnp.float32)

    return {
        "embed": 0.02 * jax.random.normal(keys[0], (VOCAB, HIDDEN), dtype=jnp.float32),
        "final_norm": 1.0 + 0.05 * jax.random.normal(keys[1], (1, HIDDEN), jnp.float32),
        "layers": {   # per-layer weights stacked along a leading layer axis
            "input_norm": norm_w(keys[2]),
            "post_norm": norm_w(keys[3]),
            "qkv": w(keys[4], (N_LAYERS, QKV_W, HIDDEN)),
            "o_proj": w(keys[5], (N_LAYERS, HIDDEN, Q_SIZE)),
            "gate_up": w(keys[6], (N_LAYERS, 2 * INTERMEDIATE, HIDDEN)),
            "down": w(keys[7], (N_LAYERS, HIDDEN, INTERMEDIATE)),
        },
    }


def rope_attention_tables(positions):
    """Full-width (T, QKV_W) cos / signed-sin tables for roll-based neox RoPE.

    Q/K head lanes carry the tiled per-head tables; V lanes are identity
    (cos=1, sin=0).  The attention scale is folded into the Q lanes.
    """
    t = positions.shape[0]
    pos = positions.astype(jnp.float32)
    inv_freq = 1.0 / (ROPE_THETA ** (jnp.arange(0, HEAD_DIM, 2, dtype=jnp.float32)
                                     / HEAD_DIM))
    freqs = pos[:, None] * inv_freq[None, :]                 # (T, HALF)
    cos, sin = jnp.cos(freqs), jnp.sin(freqs)
    zeros = jnp.zeros_like(sin)
    cos_h = jnp.concatenate([cos, cos], axis=-1)             # (T, HEAD_DIM)
    sina_h = jnp.concatenate([-sin, zeros], axis=-1)         # multiplies roll(+half)
    sinb_h = jnp.concatenate([zeros, sin], axis=-1)          # multiplies roll(-half)
    scale = HEAD_DIM ** -0.5
    ones_v = jnp.ones((t, KV_SIZE), jnp.float32)
    zeros_v = jnp.zeros((t, KV_SIZE), jnp.float32)

    def full(head_tab, v_tab):
        return jnp.concatenate([jnp.tile(head_tab, (1, N_HEADS)) * scale,  # Q lanes
                                jnp.tile(head_tab, (1, N_KV_HEADS)),       # K lanes
                                v_tab], axis=-1)                           # V lanes

    return full(cos_h, ones_v), full(sina_h, zeros_v), full(sinb_h, zeros_v)


@jax.jit
def llama_forward(params, input_ids, positions):
    # Embedding gather stays in plain JAX (data-dependent gather glue).
    h = jnp.take(params["embed"], input_ids, axis=0)          # (T, HIDDEN) f32
    cos_t, sin_a, sin_b = rope_attention_tables(positions)
    return llama_layers(h, cos_t, sin_a, sin_b, params["layers"], params["final_norm"])


# ---------------- pure-JAX reference (mirrors the kernel's precision policy) ----------------

def _ref_matT(x, w):
    return lax.dot_general(x.astype(COMPUTE_DTYPE), w,
                           dimension_numbers=(((1,), (1,)), ((), ())),
                           preferred_element_type=jnp.float32)


def _ref_rmsnorm(x, w):
    x = x.astype(jnp.float32)
    var = jnp.mean(x * x, axis=-1, keepdims=True)
    return x * lax.rsqrt(var + EPS) * w[0].astype(jnp.float32)


def _ref_rope(x, cos, sin):
    x1, x2 = x[..., :HALF], x[..., HALF:]
    c, s = cos[:, None, :], sin[:, None, :]
    return jnp.concatenate([x1 * c - x2 * s, x2 * c + x1 * s], axis=-1)


def ref_forward(params, input_ids, positions):
    h = jnp.take(params["embed"], input_ids, axis=0)
    pos = positions.astype(jnp.float32)
    inv_freq = 1.0 / (ROPE_THETA ** (jnp.arange(0, HEAD_DIM, 2, dtype=jnp.float32)
                                     / HEAD_DIM))
    freqs = pos[:, None] * inv_freq[None, :]
    cos, sin = jnp.cos(freqs), jnp.sin(freqs)
    t = input_ids.shape[0]
    causal = jnp.tril(jnp.ones((t, t), bool))
    residual = jnp.zeros_like(h)
    scale = HEAD_DIM ** -0.5
    lw = params["layers"]
    for l in range(N_LAYERS):
        residual = h + residual
        hn = _ref_rmsnorm(residual, lw["input_norm"][l])
        qkv = _ref_matT(hn, lw["qkv"][l])
        q = _ref_rope(qkv[:, :Q_SIZE].reshape(t, N_HEADS, HEAD_DIM), cos, sin)
        k = _ref_rope(qkv[:, Q_SIZE:Q_SIZE + KV_SIZE].reshape(t, N_KV_HEADS, HEAD_DIM),
                      cos, sin)
        v = qkv[:, Q_SIZE + KV_SIZE:].reshape(t, N_KV_HEADS, HEAD_DIM)
        k = jnp.repeat(k, GROUP, axis=1)
        v = jnp.repeat(v, GROUP, axis=1)
        s = jnp.einsum("qhd,khd->hqk", q, k, preferred_element_type=jnp.float32) * scale
        s = jnp.where(causal[None], s, -1e30)
        p = jax.nn.softmax(s, axis=-1)
        o = jnp.einsum("hqk,khd->qhd", p, v,
                       preferred_element_type=jnp.float32).reshape(t, Q_SIZE)
        residual = _ref_matT(o, lw["o_proj"][l]) + residual
        hn = _ref_rmsnorm(residual, lw["post_norm"][l])
        gu = _ref_matT(hn, lw["gate_up"][l])
        gate, up = gu[:, :INTERMEDIATE], gu[:, INTERMEDIATE:]
        h = _ref_matT(gate * jax.nn.sigmoid(gate) * up, lw["down"][l])
    return _ref_rmsnorm(h + residual, params["final_norm"])


# ---------------- main ----------------

if __name__ == "__main__":
    key = jax.random.PRNGKey(0)
    pkey, ikey = jax.random.split(key)
    params = init_params(pkey)

    input_ids = jax.random.randint(ikey, (T,), 0, VOCAB, dtype=jnp.int32)
    positions = jnp.arange(T, dtype=jnp.int32)

    hidden = jax.block_until_ready(llama_forward(params, input_ids, positions))

    # lm_head tied to the embedding table (tie_word_embeddings).
    lm_head_w = params["embed"].astype(COMPUTE_DTYPE)
    logits = jax.block_until_ready(compute_logits(hidden, lm_head_w))

    ref_hidden = ref_forward(params, input_ids, positions)
    ref_logits = _ref_matT(ref_hidden, lm_head_w)

    assert hidden.shape == (T, HIDDEN)
    assert logits.shape == (T, VOCAB)
    assert bool(jnp.isfinite(hidden).all()) and bool(jnp.isfinite(logits).all())
    assert bool(jnp.allclose(hidden, ref_hidden, rtol=2e-2, atol=2e-2)), \
        float(jnp.max(jnp.abs(hidden - ref_hidden)))
    assert bool(jnp.allclose(logits, ref_logits, rtol=2e-2, atol=2e-2)), \
        float(jnp.max(jnp.abs(logits - ref_logits)))

    print("KERNEL_OK")
</pallas_src>

<mosaic_0001>
module attributes {stable_mosaic.version = 11 : i64} {
  func.func @_llama_layers_kernel(%arg0: i32, %arg1: memref<16x128xf32, #tpu.memory_space<vmem>>, %arg2: memref<16x256xf32, #tpu.memory_space<vmem>>, %arg3: memref<16x256xf32, #tpu.memory_space<vmem>>, %arg4: memref<16x256xf32, #tpu.memory_space<vmem>>, %arg5: memref<1x1x128xf32, #tpu.memory_space<vmem>>, %arg6: memref<1x1x128xf32, #tpu.memory_space<vmem>>, %arg7: memref<1x256x128xbf16, #tpu.memory_space<vmem>>, %arg8: memref<1x128x128xbf16, #tpu.memory_space<vmem>>, %arg9: memref<1x512x128xbf16, #tpu.memory_space<vmem>>, %arg10: memref<1x128x256xbf16, #tpu.memory_space<vmem>>, %arg11: memref<1x128xf32, #tpu.memory_space<vmem>>, %arg12: memref<16x128xf32, #tpu.memory_space<vmem>>, %arg13: memref<16x128xf32, #tpu.memory_space<vmem>>, %arg14: memref<16x128xf32, #tpu.memory_space<vmem>>) attributes {dimension_semantics = [#tpu.dimension_semantics<arbitrary>], iteration_bounds = array<i64: 2>, scalar_prefetch = 0 : i64, scratch_operands = 2 : i64, tpu.core_type = #tpu.core_type<tc>, window_params = [{pipeline_mode = #tpu.pipeline_mode<synchronous>, transform_indices = @transform_0, window_bounds = array<i64: 16, 128>}, {pipeline_mode = #tpu.pipeline_mode<synchronous>, transform_indices = @transform_1, window_bounds = array<i64: 16, 256>}, {pipeline_mode = #tpu.pipeline_mode<synchronous>, transform_indices = @transform_2, window_bounds = array<i64: 16, 256>}, {pipeline_mode = #tpu.pipeline_mode<synchronous>, transform_indices = @transform_3, window_bounds = array<i64: 16, 256>}, {transform_indices = @transform_4, window_bounds = array<i64: 1, 1, 128>}, {transform_indices = @transform_5, window_bounds = array<i64: 1, 1, 128>}, {transform_indices = @transform_6, window_bounds = array<i64: 1, 256, 128>}, {transform_indices = @transform_7, window_bounds = array<i64: 1, 128, 128>}, {transform_indices = @transform_8, window_bounds = array<i64: 1, 512, 128>}, {transform_indices = @transform_9, window_bounds = array<i64: 1, 128, 256>}, {pipeline_mode = #tpu.pipeline_mode<synchronous>, transform_indices = @transform_10, window_bounds = array<i64: 1, 128>}, {pipeline_mode = #tpu.pipeline_mode<synchronous>, transform_indices = @transform_11, window_bounds = array<i64: 16, 128>}]} {
    %c0_i32 = arith.constant 0 : i32
    %0 = arith.cmpi eq, %arg0, %c0_i32 : i32
    %1 = arith.extui %0 : i1 to i32
    %c0_i32_0 = arith.constant 0 : i32
    %2 = arith.cmpi ne, %1, %c0_i32_0 : i32
    scf.if %2 {
      %c0_61 = arith.constant 0 : index
      %c0_62 = arith.constant 0 : index
      %162 = vector.load %arg1[%c0_61, %c0_62] : memref<16x128xf32, #tpu.memory_space<vmem>>, vector<16x128xf32>
      %c0_63 = arith.constant 0 : index
      %c0_64 = arith.constant 0 : index
      %163 = vector.load %arg13[%c0_63, %c0_64] : memref<16x128xf32, #tpu.memory_space<vmem>>, vector<16x128xf32>
      tpu.vector_store %arg13[%c0_63, %c0_64], %162 {strides = array<i32>} : memref<16x128xf32, #tpu.memory_space<vmem>>, vector<16x128xf32>,
      %cst_65 = arith.constant 0.000000e+00 : f32
      %164 = vector.broadcast %cst_65 : f32 to vector<16x128xf32>
      %c0_66 = arith.constant 0 : index
      %c0_67 = arith.constant 0 : index
      %165 = vector.load %arg14[%c0_66, %c0_67] : memref<16x128xf32, #tpu.memory_space<vmem>>, vector<16x128xf32>
      tpu.vector_store %arg14[%c0_66, %c0_67], %164 {strides = array<i32>} : memref<16x128xf32, #tpu.memory_space<vmem>>, vector<16x128xf32>,
    } else {
    }
    %c0 = arith.constant 0 : index
    %c0_1 = arith.constant 0 : index
    %3 = vector.load %arg13[%c0, %c0_1] : memref<16x128xf32, #tpu.memory_space<vmem>>, vector<16x128xf32>
    %c0_2 = arith.constant 0 : index
    %c0_3 = arith.constant 0 : index
    %4 = vector.load %arg14[%c0_2, %c0_3] : memref<16x128xf32, #tpu.memory_space<vmem>>, vector<16x128xf32>
    %5 = arith.addf %3, %4 : vector<16x128xf32>
    %c0_4 = arith.constant 0 : index
    %c0_5 = arith.constant 0 : index
    %c0_6 = arith.constant 0 : index
    %6 = vector.load %arg5[%c0_4, %c0_5, %c0_6] : memref<1x1x128xf32, #tpu.memory_space<vmem>>, vector<1x1x128xf32>
    %7 = vector.shape_cast %6 : vector<1x1x128xf32> to vector<1x128xf32>
    %8 = arith.mulf %5, %5 : vector<16x128xf32>
    %cst = arith.constant dense<0.000000e+00> : vector<16xf32>
    %9 = vector.multi_reduction <add>, %8, %cst [1] : vector<16x128xf32> to vector<16xf32>
    %10 = vector.shape_cast %9 : vector<16xf32> to vector<16x1xf32>
    %cst_7 = arith.constant 1.280000e+02 : f32
    %11 = vector.broadcast %cst_7 : f32 to vector<16x1xf32>
    %12 = arith.divf %10, %11 : vector<16x1xf32>
    %cst_8 = arith.constant 9.99999997E-7 : f32
    %13 = vector.broadcast %cst_8 : f32 to vector<16x1xf32>
    %14 = arith.addf %12, %13 : vector<16x1xf32>
    %15 = math.rsqrt %14 : vector<16x1xf32>
    %16 = vector.broadcast %15 : vector<16x1xf32> to vector<16x128xf32>
    %17 = arith.mulf %5, %16 : vector<16x128xf32>
    %18 = vector.broadcast %7 : vector<1x128xf32> to vector<16x128xf32>
    %19 = arith.mulf %17, %18 : vector<16x128xf32>
    %c0_9 = arith.constant 0 : index
    %c0_10 = arith.constant 0 : index
    %c0_11 = arith.constant 0 : index
    %20 = vector.load %arg7[%c0_9, %c0_10, %c0_11] : memref<1x256x128xbf16, #tpu.memory_space<vmem>>, vector<1x256x128xbf16>
    %21 = vector.shape_cast %20 : vector<1x256x128xbf16> to vector<256x128xbf16>
    %22 = arith.truncf %19 : vector<16x128xf32> to vector<16x128xbf16>
    %cst_12 = arith.constant dense<0.000000e+00> : vector<16x256xf32>
    %23 = tpu.matmul %22, %21, %cst_12 {dimension_numbers = #tpu.dot_dimension_numbers<[1], [1], [0], [0], [0, 0, 1, 0], [], []>} : vector<16x128xbf16>, vector<256x128xbf16>, vector<16x256xf32> -> vector<16x256xf32>
    %c240_i32 = arith.constant 240 : i32
    %24 = tpu.dynamic_rotate %23 by %c240_i32 dim 1 : vector<16x256xf32>, i32 -> vector<16x256xf32>
    %c16_i32 = arith.constant 16 : i32
    %25 = tpu.dynamic_rotate %23 by %c16_i32 dim 1 : vector<16x256xf32>, i32 -> vector<16x256xf32>
    %c0_13 = arith.constant 0 : index
    %c0_14 = arith.constant 0 : index
    %26 = vector.load %arg2[%c0_13, %c0_14] : memref<16x256xf32, #tpu.memory_space<vmem>>, vector<16x256xf32>
    %27 = arith.mulf %23, %26 : vector<16x256xf32>
    %c0_15 = arith.constant 0 : index
    %c0_16 = arith.constant 0 : index
    %28 = vector.load %arg3[%c0_15, %c0_16] : memref<16x256xf32, #tpu.memory_space<vmem>>, vector<16x256xf32>
    %29 = arith.mulf %24, %28 : vector<16x256xf32>
    %30 = arith.addf %27, %29 : vector<16x256xf32>
    %c0_17 = arith.constant 0 : index
    %c0_18 = arith.constant 0 : index
    %31 = vector.load %arg4[%c0_17, %c0_18] : memref<16x256xf32, #tpu.memory_space<vmem>>, vector<16x256xf32>
    %32 = arith.mulf %25, %31 : vector<16x256xf32>
    %33 = arith.addf %30, %32 : vector<16x256xf32>
    %34 = tpu.iota {dimensions = array<i32: 0>} : vector<16x16xi32>
    %35 = tpu.iota {dimensions = array<i32: 1>} : vector<16x16xi32>
    %36 = arith.cmpi sge, %34, %35 : vector<16x16xi32>
    %cst_19 = arith.constant 0.000000e+00 : f32
    %cst_20 = arith.constant -1.000000e+30 : f32
    %37 = vector.broadcast %cst_19 : f32 to vector<16x16xf32>
    %38 = vector.broadcast %cst_20 : f32 to vector<16x16xf32>
    %39 = arith.select %36, %37, %38 : vector<16x16xi1>, vector<16x16xf32>
    %40 = vector.extract_strided_slice %33 {offsets = [0, 0], sizes = [16, 32], strides = [1, 1]} : vector<16x256xf32> to vector<16x32xf32>
    %41 = vector.extract_strided_slice %33 {offsets = [0, 128], sizes = [16, 32], strides = [1, 1]} : vector<16x256xf32> to vector<16x32xf32>
    %42 = vector.extract_strided_slice %33 {offsets = [0, 192], sizes = [16, 32], strides = [1, 1]} : vector<16x256xf32> to vector<16x32xf32>
    %43 = arith.truncf %40 : vector<16x32xf32> to vector<16x32xbf16>
    %44 = arith.truncf %41 : vector<16x32xf32> to vector<16x32xbf16>
    %cst_21 = arith.constant dense<0.000000e+00> : vector<16x16xf32>
    %45 = tpu.matmul %43, %44, %cst_21 {dimension_numbers = #tpu.dot_dimension_numbers<[1], [1], [0], [0], [0, 0, 1, 0], [], []>} : vector<16x32xbf16>, vector<16x32xbf16>, vector<16x16xf32> -> vector<16x16xf32>
    %46 = arith.addf %45, %39 : vector<16x16xf32>
    %cst_22 = arith.constant dense<0xFF800000> : vector<16xf32>
    %47 = vector.multi_reduction <maximumf>, %46, %cst_22 [1] : vector<16x16xf32> to vector<16xf32>
    %48 = vector.shape_cast %47 : vector<16xf32> to vector<16x1xf32>
    %49 = vector.broadcast %48 : vector<16x1xf32> to vector<16x16xf32>
    %50 = arith.subf %46, %49 : vector<16x16xf32>
    %51 = math.exp %50 : vector<16x16xf32>
    %cst_23 = arith.constant dense<0.000000e+00> : vector<16xf32>
    %52 = vector.multi_reduction <add>, %51, %cst_23 [1] : vector<16x16xf32> to vector<16xf32>
    %53 = vector.shape_cast %52 : vector<16xf32> to vector<16x1xf32>
    %54 = tpu.reciprocal %53 : vector<16x1xf32> -> vector<16x1xf32>
    %55 = arith.truncf %51 : vector<16x16xf32> to vector<16x16xbf16>
    %56 = arith.truncf %42 : vector<16x32xf32> to vector<16x32xbf16>
    %cst_24 = arith.constant dense<0.000000e+00> : vector<16x32xf32>
    %57 = tpu.matmul %55, %56, %cst_24 {dimension_numbers = #tpu.dot_dimension_numbers<[1], [0], [0], [1], [0, 0, 1, 1], [], []>} : vector<16x16xbf16>, vector<16x32xbf16>, vector<16x32xf32> -> vector<16x32xf32>
    %58 = vector.broadcast %54 : vector<16x1xf32> to vector<16x32xf32>
    %59 = arith.mulf %57, %58 : vector<16x32xf32>
    %60 = vector.extract_strided_slice %33 {offsets = [0, 32], sizes = [16, 32], strides = [1, 1]} : vector<16x256xf32> to vector<16x32xf32>
    %61 = vector.extract_strided_slice %33 {offsets = [0, 128], sizes = [16, 32], strides = [1, 1]} : vector<16x256xf32> to vector<16x32xf32>
    %62 = vector.extract_strided_slice %33 {offsets = [0, 192], sizes = [16, 32], strides = [1, 1]} : vector<16x256xf32> to vector<16x32xf32>
    %63 = arith.truncf %60 : vector<16x32xf32> to vector<16x32xbf16>
    %64 = arith.truncf %61 : vector<16x32xf32> to vector<16x32xbf16>
    %cst_25 = arith.constant dense<0.000000e+00> : vector<16x16xf32>
    %65 = tpu.matmul %63, %64, %cst_25 {dimension_numbers = #tpu.dot_dimension_numbers<[1], [1], [0], [0], [0, 0, 1, 0], [], []>} : vector<16x32xbf16>, vector<16x32xbf16>, vector<16x16xf32> -> vector<16x16xf32>
    %66 = arith.addf %65, %39 : vector<16x16xf32>
    %cst_26 = arith.constant dense<0xFF800000> : vector<16xf32>
    %67 = vector.multi_reduction <maximumf>, %66, %cst_26 [1] : vector<16x16xf32> to vector<16xf32>
    %68 = vector.shape_cast %67 : vector<16xf32> to vector<16x1xf32>
    %69 = vector.broadcast %68 : vector<16x1xf32> to vector<16x16xf32>
    %70 = arith.subf %66, %69 : vector<16x16xf32>
    %71 = math.exp %70 : vector<16x16xf32>
    %cst_27 = arith.constant dense<0.000000e+00> : vector<16xf32>
    %72 = vector.multi_reduction <add>, %71, %cst_27 [1] : vector<16x16xf32> to vector<16xf32>
    %73 = vector.shape_cast %72 : vector<16xf32> to vector<16x1xf32>
    %74 = tpu.reciprocal %73 : vector<16x1xf32> -> vector<16x1xf32>
    %75 = arith.truncf %71 : vector<16x16xf32> to vector<16x16xbf16>
    %76 = arith.truncf %62 : vector<16x32xf32> to vector<16x32xbf16>
    %cst_28 = arith.constant dense<0.000000e+00> : vector<16x32xf32>
    %77 = tpu.matmul %75, %76, %cst_28 {dimension_numbers = #tpu.dot_dimension_numbers<[1], [0], [0], [1], [0, 0, 1, 1], [], []>} : vector<16x16xbf16>, vector<16x32xbf16>, vector<16x32xf32> -> vector<16x32xf32>
    %78 = vector.broadcast %74 : vector<16x1xf32> to vector<16x32xf32>
    %79 = arith.mulf %77, %78 : vector<16x32xf32>
    %80 = vector.extract_strided_slice %33 {offsets = [0, 64], sizes = [16, 32], strides = [1, 1]} : vector<16x256xf32> to vector<16x32xf32>
    %81 = vector.extract_strided_slice %33 {offsets = [0, 160], sizes = [16, 32], strides = [1, 1]} : vector<16x256xf32> to vector<16x32xf32>
    %82 = vector.extract_strided_slice %33 {offsets = [0, 224], sizes = [16, 32], strides = [1, 1]} : vector<16x256xf32> to vector<16x32xf32>
    %83 = arith.truncf %80 : vector<16x32xf32> to vector<16x32xbf16>
    %84 = arith.truncf %81 : vector<16x32xf32> to vector<16x32xbf16>
    %cst_29 = arith.constant dense<0.000000e+00> : vector<16x16xf32>
    %85 = tpu.matmul %83, %84, %cst_29 {dimension_numbers = #tpu.dot_dimension_numbers<[1], [1], [0], [0], [0, 0, 1, 0], [], []>} : vector<16x32xbf16>, vector<16x32xbf16>, vector<16x16xf32> -> vector<16x16xf32>
    %86 = arith.addf %85, %39 : vector<16x16xf32>
    %cst_30 = arith.constant dense<0xFF800000> : vector<16xf32>
    %87 = vector.multi_reduction <maximumf>, %86, %cst_30 [1] : vector<16x16xf32> to vector<16xf32>
    %88 = vector.shape_cast %87 : vector<16xf32> to vector<16x1xf32>
    %89 = vector.broadcast %88 : vector<16x1xf32> to vector<16x16xf32>
    %90 = arith.subf %86, %89 : vector<16x16xf32>
    %91 = math.exp %90 : vector<16x16xf32>
    %cst_31 = arith.constant dense<0.000000e+00> : vector<16xf32>
    %92 = vector.multi_reduction <add>, %91, %cst_31 [1] : vector<16x16xf32> to vector<16xf32>
    %93 = vector.shape_cast %92 : vector<16xf32> to vector<16x1xf32>
    %94 = tpu.reciprocal %93 : vector<16x1xf32> -> vector<16x1xf32>
    %95 = arith.truncf %91 : vector<16x16xf32> to vector<16x16xbf16>
    %96 = arith.truncf %82 : vector<16x32xf32> to vector<16x32xbf16>
    %cst_32 = arith.constant dense<0.000000e+00> : vector<16x32xf32>
    %97 = tpu.matmul %95, %96, %cst_32 {dimension_numbers = #tpu.dot_dimension_numbers<[1], [0], [0], [1], [0, 0, 1, 1], [], []>} : vector<16x16xbf16>, vector<16x32xbf16>, vector<16x32xf32> -> vector<16x32xf32>
    %98 = vector.broadcast %94 : vector<16x1xf32> to vector<16x32xf32>
    %99 = arith.mulf %97, %98 : vector<16x32xf32>
    %100 = vector.extract_strided_slice %33 {offsets = [0, 96], sizes = [16, 32], strides = [1, 1]} : vector<16x256xf32> to vector<16x32xf32>
    %101 = vector.extract_strided_slice %33 {offsets = [0, 160], sizes = [16, 32], strides = [1, 1]} : vector<16x256xf32> to vector<16x32xf32>
    %102 = vector.extract_strided_slice %33 {offsets = [0, 224], sizes = [16, 32], strides = [1, 1]} : vector<16x256xf32> to vector<16x32xf32>
    %103 = arith.truncf %100 : vector<16x32xf32> to vector<16x32xbf16>
    %104 = arith.truncf %101 : vector<16x32xf32> to vector<16x32xbf16>
    %cst_33 = arith.constant dense<0.000000e+00> : vector<16x16xf32>
    %105 = tpu.matmul %103, %104, %cst_33 {dimension_numbers = #tpu.dot_dimension_numbers<[1], [1], [0], [0], [0, 0, 1, 0], [], []>} : vector<16x32xbf16>, vector<16x32xbf16>, vector<16x16xf32> -> vector<16x16xf32>
    %106 = arith.addf %105, %39 : vector<16x16xf32>
    %cst_34 = arith.constant dense<0xFF800000> : vector<16xf32>
    %107 = vector.multi_reduction <maximumf>, %106, %cst_34 [1] : vector<16x16xf32> to vector<16xf32>
    %108 = vector.shape_cast %107 : vector<16xf32> to vector<16x1xf32>
    %109 = vector.broadcast %108 : vector<16x1xf32> to vector<16x16xf32>
    %110 = arith.subf %106, %109 : vector<16x16xf32>
    %111 = math.exp %110 : vector<16x16xf32>
    %cst_35 = arith.constant dense<0.000000e+00> : vector<16xf32>
    %112 = vector.multi_reduction <add>, %111, %cst_35 [1] : vector<16x16xf32> to vector<16xf32>
    %113 = vector.shape_cast %112 : vector<16xf32> to vector<16x1xf32>
    %114 = tpu.reciprocal %113 : vector<16x1xf32> -> vector<16x1xf32>
    %115 = arith.truncf %111 : vector<16x16xf32> to vector<16x16xbf16>
    %116 = arith.truncf %102 : vector<16x32xf32> to vector<16x32xbf16>
    %cst_36 = arith.constant dense<0.000000e+00> : vector<16x32xf32>
    %117 = tpu.matmul %115, %116, %cst_36 {dimension_numbers = #tpu.dot_dimension_numbers<[1], [0], [0], [1], [0, 0, 1, 1], [], []>} : vector<16x16xbf16>, vector<16x32xbf16>, vector<16x32xf32> -> vector<16x32xf32>
    %118 = vector.broadcast %114 : vector<16x1xf32> to vector<16x32xf32>
    %119 = arith.mulf %117, %118 : vector<16x32xf32>
    %120 = tpu.concatenate %59, %79, %99, %119 in 1 : vector<16x32xf32>, vector<16x32xf32>, vector<16x32xf32>, vector<16x32xf32> -> vector<16x128xf32>
    %c0_37 = arith.constant 0 : index
    %c0_38 = arith.constant 0 : index
    %c0_39 = arith.constant 0 : index
    %121 = vector.load %arg8[%c0_37, %c0_38, %c0_39] : memref<1x128x128xbf16, #tpu.memory_space<vmem>>, vector<1x128x128xbf16>
    %122 = vector.shape_cast %121 : vector<1x128x128xbf16> to vector<128x128xbf16>
    %123 = arith.truncf %120 : vector<16x128xf32> to vector<16x128xbf16>
    %cst_40 = arith.constant dense<0.000000e+00> : vector<16x128xf32>
    %124 = tpu.matmul %123, %122, %cst_40 {dimension_numbers = #tpu.dot_dimension_numbers<[1], [1], [0], [0], [0, 0, 1, 0], [], []>} : vector<16x128xbf16>, vector<128x128xbf16>, vector<16x128xf32> -> vector<16x128xf32>
    %125 = arith.addf %124, %5 : vector<16x128xf32>
    %c0_41 = arith.constant 0 : index
    %c0_42 = arith.constant 0 : index
    %126 = vector.load %arg14[%c0_41, %c0_42] : memref<16x128xf32, #tpu.memory_space<vmem>>, vector<16x128xf32>
    tpu.vector_store %arg14[%c0_41, %c0_42], %125 {strides = array<i32>} : memref<16x128xf32, #tpu.memory_space<vmem>>, vector<16x128xf32>,
    %c0_43 = arith.constant 0 : index
    %c0_44 = arith.constant 0 : index
    %c0_45 = arith.constant 0 : index
    %127 = vector.load %arg6[%c0_43, %c0_44, %c0_45] : memref<1x1x128xf32, #tpu.memory_space<vmem>>, vector<1x1x128xf32>
    %128 = vector.shape_cast %127 : vector<1x1x128xf32> to vector<1x128xf32>
    %129 = arith.mulf %125, %125 : vector<16x128xf32>
    %cst_46 = arith.constant dense<0.000000e+00> : vector<16xf32>
    %130 = vector.multi_reduction <add>, %129, %cst_46 [1] : vector<16x128xf32> to vector<16xf32>
    %131 = vector.shape_cast %130 : vector<16xf32> to vector<16x1xf32>
    %cst_47 = arith.constant 1.280000e+02 : f32
    %132 = vector.broadcast %cst_47 : f32 to vector<16x1xf32>
    %133 = arith.divf %131, %132 : vector<16x1xf32>
    %cst_48 = arith.constant 9.99999997E-7 : f32
    %134 = vector.broadcast %cst_48 : f32 to vector<16x1xf32>
    %135 = arith.addf %133, %134 : vector<16x1xf32>
    %136 = math.rsqrt %135 : vector<16x1xf32>
    %137 = vector.broadcast %136 : vector<16x1xf32> to vector<16x128xf32>
    %138 = arith.mulf %125, %137 : vector<16x128xf32>
    %139 = vector.broadcast %128 : vector<1x128xf32> to vector<16x128xf32>
    %140 = arith.mulf %138, %139 : vector<16x128xf32>
    %c0_49 = arith.constant 0 : index
    %c0_50 = arith.constant 0 : index
    %c0_51 = arith.constant 0 : index
    %141 = vector.load %arg9[%c0_49, %c0_50, %c0_51] : memref<1x512x128xbf16, #tpu.memory_space<vmem>>, vector<1x512x128xbf16>
    %142 = vector.shape_cast %141 : vector<1x512x128xbf16> to vector<512x128xbf16>
    %143 = arith.truncf %140 : vector<16x128xf32> to vector<16x128xbf16>
    %cst_52 = arith.constant dense<0.000000e+00> : vector<16x512xf32>
    %144 = tpu.matmul %143, %142, %cst_52 {dimension_numbers = #tpu.dot_dimension_numbers<[1], [1], [0], [0], [0, 0, 1, 0], [], []>} : vector<16x128xbf16>, vector<512x128xbf16>, vector<16x512xf32> -> vector<16x512xf32>
    %145 = vector.extract_strided_slice %144 {offsets = [0, 0], sizes = [16, 256], strides = [1, 1]} : vector<16x512xf32> to vector<16x256xf32>
    %146 = vector.extract_strided_slice %144 {offsets = [0, 256], sizes = [16, 256], strides = [1, 1]} : vector<16x512xf32> to vector<16x256xf32>
    %147 = arith.negf %145 : vector<16x256xf32>
    %148 = math.exp %147 : vector<16x256xf32>
    %cst_53 = arith.constant 1.000000e+00 : f32
    %149 = vector.broadcast %cst_53 : f32 to vector<16x256xf32>
    %150 = arith.addf %149, %148 : vector<16x256xf32>
    %151 = arith.divf %149, %150 : vector<16x256xf32>
    %152 = arith.mulf %145, %151 : vector<16x256xf32>
    %153 = arith.mulf %152, %146 : vector<16x256xf32>
    %c0_54 = arith.constant 0 : index
    %c0_55 = arith.constant 0 : index
    %c0_56 = arith.constant 0 : index
    %154 = vector.load %arg10[%c0_54, %c0_55, %c0_56] : memref<1x128x256xbf16, #tpu.memory_space<vmem>>, vector<1x128x256xbf16>
    %155 = vector.shape_cast %154 : vector<1x128x256xbf16> to vector<128x256xbf16>
    %156 = arith.truncf %153 : vector<16x256xf32> to vector<16x256xbf16>
    %cst_57 = arith.constant dense<0.000000e+00> : vector<16x128xf32>
    %157 = tpu.matmul %156, %155, %cst_57 {dimension_numbers = #tpu.dot_dimension_numbers<[1], [1], [0], [0], [0, 0, 1, 0], [], []>} : vector<16x256xbf16>, vector<128x256xbf16>, vector<16x128xf32> -> vector<16x128xf32>
    %c0_58 = arith.constant 0 : index
    %c0_59 = arith.constant 0 : index
    %158 = vector.load %arg13[%c0_58, %c0_59] : memref<16x128xf32, #tpu.memory_space<vmem>>, vector<16x128xf32>
    tpu.vector_store %arg13[%c0_58, %c0_59], %157 {strides = array<i32>} : memref<16x128xf32, #tpu.memory_space<vmem>>, vector<16x128xf32>,
    %c1_i32 = arith.constant 1 : i32
    %159 = arith.cmpi eq, %arg0, %c1_i32 : i32
    %160 = arith.extui %159 : i1 to i32
    %c0_i32_60 = arith.constant 0 : i32
    %161 = arith.cmpi ne, %160, %c0_i32_60 : i32
    scf.if %161 {
      %162 = arith.addf %157, %125 : vector<16x128xf32>
      %c0_61 = arith.constant 0 : index
      %c0_62 = arith.constant 0 : index
      %163 = vector.load %arg11[%c0_61, %c0_62] : memref<1x128xf32, #tpu.memory_space<vmem>>, vector<1x128xf32>
      %164 = arith.mulf %162, %162 : vector<16x128xf32>
      %cst_63 = arith.constant dense<0.000000e+00> : vector<16xf32>
      %165 = vector.multi_reduction <add>, %164, %cst_63 [1] : vector<16x128xf32> to vector<16xf32>
      %166 = vector.shape_cast %165 : vector<16xf32> to vector<16x1xf32>
      %cst_64 = arith.constant 1.280000e+02 : f32
      %167 = vector.broadcast %cst_64 : f32 to vector<16x1xf32>
      %168 = arith.divf %166, %167 : vector<16x1xf32>
      %cst_65 = arith.constant 9.99999997E-7 : f32
      %169 = vector.broadcast %cst_65 : f32 to vector<16x1xf32>
      %170 = arith.addf %168, %169 : vector<16x1xf32>
      %171 = math.rsqrt %170 : vector<16x1xf32>
      %172 = vector.broadcast %171 : vector<16x1xf32> to vector<16x128xf32>
      %173 = arith.mulf %162, %172 : vector<16x128xf32>
      %174 = vector.broadcast %163 : vector<1x128xf32> to vector<16x128xf32>
      %175 = arith.mulf %173, %174 : vector<16x128xf32>
      %c0_66 = arith.constant 0 : index
      %c0_67 = arith.constant 0 : index
      %176 = vector.load %arg12[%c0_66, %c0_67] : memref<16x128xf32, #tpu.memory_space<vmem>>, vector<16x128xf32>
      tpu.vector_store %arg12[%c0_66, %c0_67], %175 {strides = array<i32>} : memref<16x128xf32, #tpu.memory_space<vmem>>, vector<16x128xf32>,
    } else {
    }
    return
  }
  func.func @transform_0(%arg0: i32) -> (i32, i32) {
    %c0_i32 = arith.constant 0 : i32
    %c0_i32_0 = arith.constant 0 : i32
    %c0_i32_1 = arith.constant 0 : i32
    return %c0_i32, %c0_i32_0 : i32, i32
  }
  func.func @transform_1(%arg0: i32) -> (i32, i32) {
    %c0_i32 = arith.constant 0 : i32
    %c0_i32_0 = arith.constant 0 : i32
    %c0_i32_1 = arith.constant 0 : i32
    return %c0_i32, %c0_i32_0 : i32, i32
  }
  func.func @transform_2(%arg0: i32) -> (i32, i32) {
    %c0_i32 = arith.constant 0 : i32
    %c0_i32_0 = arith.constant 0 : i32
    %c0_i32_1 = arith.constant 0 : i32
    return %c0_i32, %c0_i32_0 : i32, i32
  }
  func.func @transform_3(%arg0: i32) -> (i32, i32) {
    %c0_i32 = arith.constant 0 : i32
    %c0_i32_0 = arith.constant 0 : i32
    %c0_i32_1 = arith.constant 0 : i32
    return %c0_i32, %c0_i32_0 : i32, i32
  }
  func.func @transform_4(%arg0: i32) -> (i32, i32, i32) {
    %c0_i32 = arith.constant 0 : i32
    %c0_i32_0 = arith.constant 0 : i32
    %c0_i32_1 = arith.constant 0 : i32
    return %arg0, %c0_i32, %c0_i32_0 : i32, i32, i32
  }
  func.func @transform_5(%arg0: i32) -> (i32, i32, i32) {
    %c0_i32 = arith.constant 0 : i32
    %c0_i32_0 = arith.constant 0 : i32
    %c0_i32_1 = arith.constant 0 : i32
    return %arg0, %c0_i32, %c0_i32_0 : i32, i32, i32
  }
  func.func @transform_6(%arg0: i32) -> (i32, i32, i32) {
    %c0_i32 = arith.constant 0 : i32
    %c0_i32_0 = arith.constant 0 : i32
    %c0_i32_1 = arith.constant 0 : i32
    return %arg0, %c0_i32, %c0_i32_0 : i32, i32, i32
  }
  func.func @transform_7(%arg0: i32) -> (i32, i32, i32) {
    %c0_i32 = arith.constant 0 : i32
    %c0_i32_0 = arith.constant 0 : i32
    %c0_i32_1 = arith.constant 0 : i32
    return %arg0, %c0_i32, %c0_i32_0 : i32, i32, i32
  }
  func.func @transform_8(%arg0: i32) -> (i32, i32, i32) {
    %c0_i32 = arith.constant 0 : i32
    %c0_i32_0 = arith.constant 0 : i32
    %c0_i32_1 = arith.constant 0 : i32
    return %arg0, %c0_i32, %c0_i32_0 : i32, i32, i32
  }
  func.func @transform_9(%arg0: i32) -> (i32, i32, i32) {
    %c0_i32 = arith.constant 0 : i32
    %c0_i32_0 = arith.constant 0 : i32
    %c0_i32_1 = arith.constant 0 : i32
    return %arg0, %c0_i32, %c0_i32_0 : i32, i32, i32
  }
  func.func @transform_10(%arg0: i32) -> (i32, i32) {
    %c0_i32 = arith.constant 0 : i32
    %c0_i32_0 = arith.constant 0 : i32
    %c0_i32_1 = arith.constant 0 : i32
    return %c0_i32, %c0_i32_0 : i32, i32
  }
  func.func @transform_11(%arg0: i32) -> (i32, i32) {
    %c0_i32 = arith.constant 0 : i32
    %c0_i32_0 = arith.constant 0 : i32
    %c0_i32_1 = arith.constant 0 : i32
    return %c0_i32, %c0_i32_0 : i32, i32
  }
}

</mosaic_0001>

<llo_original>
// kernel: tile.49
$region0: #{tile.49}
  %s0 = inlined_call_operand.vmem [shape: f32[16,2,32], index: 0, kind: input, shape index: {}]
  %s1 = inlined_call_operand.vmem [shape: f32[16,64], index: 1, kind: output, shape index: {}]
  $region1: #{tile.49} parent=0
    #allocation0 [shape = 'u8[65536]{0}', space=vmem, size = 0x10000, scoped, tag = 'scoped mem for input reshape']
    %s3 = sshllo.u32 0, 2
    %s4 = smul.addr 2, 15
    %s5 = scalar_lea.vmem %s0, %s4
    %v6 = vld [vmem:[%s5] sm:%s3]
    %s7 = scalar_lea.vmem [#allocation0], 120
    %8 = vst [vmem:[%s7] sm:%s3] %v6
    %s9 = smul.addr 2, 14
    %s10 = scalar_lea.vmem %s0, %s9
    %v11 = vld [vmem:[%s10] sm:%s3]
    %s12 = scalar_lea.vmem [#allocation0], 112
    %13 = vst [vmem:[%s12] sm:%s3] %v11
    %s14 = smul.addr 2, 13
    %s15 = scalar_lea.vmem %s0, %s14
    %v16 = vld [vmem:[%s15] sm:%s3]
    %s17 = scalar_lea.vmem [#allocation0], 104
    %18 = vst [vmem:[%s17] sm:%s3] %v16
    %s19 = smul.addr 2, 12
    %s20 = scalar_lea.vmem %s0, %s19
    %v21 = vld [vmem:[%s20] sm:%s3]
    %s22 = scalar_lea.vmem [#allocation0], 96
    %23 = vst [vmem:[%s22] sm:%s3] %v21
    %s24 = smul.addr 2, 11
    %s25 = scalar_lea.vmem %s0, %s24
    %v26 = vld [vmem:[%s25] sm:%s3]
    %s27 = scalar_lea.vmem [#allocation0], 88
    %28 = vst [vmem:[%s27] sm:%s3] %v26
    %s29 = smul.addr 2, 10
    %s30 = scalar_lea.vmem %s0, %s29
    %v31 = vld [vmem:[%s30] sm:%s3]
    %s32 = scalar_lea.vmem [#allocation0], 80
    %33 = vst [vmem:[%s32] sm:%s3] %v31
    %s34 = smul.addr 2, 9
    %s35 = scalar_lea.vmem %s0, %s34
    %v36 = vld [vmem:[%s35] sm:%s3]
    %s37 = scalar_lea.vmem [#allocation0], 72
    %38 = vst [vmem:[%s37] sm:%s3] %v36
    %s39 = smul.addr 2, 8
    %s40 = scalar_lea.vmem %s0, %s39
    %v41 = vld [vmem:[%s40] sm:%s3]
    %s42 = scalar_lea.vmem [#allocation0], 64
    %43 = vst [vmem:[%s42] sm:%s3] %v41
    %s44 = smul.addr 2, 7
    %s45 = scalar_lea.vmem %s0, %s44
    %v46 = vld [vmem:[%s45] sm:%s3]
    %s47 = scalar_lea.vmem [#allocation0], 56
    %48 = vst [vmem:[%s47] sm:%s3] %v46
    %s49 = smul.addr 2, 6
    %s50 = scalar_lea.vmem %s0, %s49
    %v51 = vld [vmem:[%s50] sm:%s3]
    %s52 = scalar_lea.vmem [#allocation0], 48
    %53 = vst [vmem:[%s52] sm:%s3] %v51
    %s54 = smul.addr 2, 5
    %s55 = scalar_lea.vmem %s0, %s54
    %v56 = vld [vmem:[%s55] sm:%s3]
    %s57 = scalar_lea.vmem [#allocation0], 40
    %58 = vst [vmem:[%s57] sm:%s3] %v56
    %s59 = smul.addr 2, 4
    %s60 = scalar_lea.vmem %s0, %s59
    %v61 = vld [vmem:[%s60] sm:%s3]
    %s62 = scalar_lea.vmem [#allocation0], 32
    %63 = vst [vmem:[%s62] sm:%s3] %v61
    %s64 = smul.addr 2, 3
    %s65 = scalar_lea.vmem %s0, %s64
    %v66 = vld [vmem:[%s65] sm:%s3]
    %s67 = scalar_lea.vmem [#allocation0], 24
    %68 = vst [vmem:[%s67] sm:%s3] %v66
    %s69 = smul.addr 2, 2
    %s70 = scalar_lea.vmem %s0, %s69
    %v71 = vld [vmem:[%s70] sm:%s3]
    %s72 = scalar_lea.vmem [#allocation0], 16
    %73 = vst [vmem:[%s72] sm:%s3] %v71
    %s74 = scalar_lea.vmem %s0, 2
    %v75 = vld [vmem:[%s74] sm:%s3]
    %s76 = scalar_lea.vmem [#allocation0], 8
    %77 = vst [vmem:[%s76] sm:%s3] %v75
    %v78 = vld [vmem:[%s0] sm:%s3]
    %79 = vst [vmem:[#allocation0] sm:%s3] %v78
    %v80 = vld [vmem:[#allocation0] ss:$8 sm:$0xf]
    %v81 = vld [vmem:[#allocation0] ss:$8 sm:$0xf0]
    %vm82 = vcmask 1047556
    %v83 = vsel %vm82, %v81, %v80
    %vm84 = vcmask 261120
    %85 = vst.msk [vmem:[%s1] sm:$0xff] %vm84, %v83
    %s86 = scalar_lea.vmem [#allocation0], 64
    %v87 = vld [vmem:[%s86] ss:$8 sm:$0xf]
    %s88 = scalar_lea.vmem [#allocation0], 64
    %v89 = vld [vmem:[%s88] ss:$8 sm:$0xf0]
    %vm90 = vcmask 1047556
    %v91 = vsel %vm90, %v89, %v87
    %vm92 = vcmask 261120
    %s93 = scalar_lea.vmem %s1, 8
    %94 = vst.msk [vmem:[%s93] sm:$0xff] %vm92, %v91
    %s95 = scalar_lea.vmem [#allocation0], 1
    %v96 = vld [vmem:[%s95] ss:$8 sm:$0xf]
    %s97 = scalar_lea.vmem [#allocation0], 1
    %v98 = vld [vmem:[%s97] ss:$8 sm:$0xf0]
    %vm99 = vcmask 1047556
    %v100 = vsel %vm99, %v98, %v96
    %101 = vrot.lane.b32.xlu0 %v100, 32
    %v102 = vpop.permute.xlu0 %101
    %vm103 = vcmask 523520
    %104 = vst.msk [vmem:[%s1] sm:$0xff] %vm103, %v102
    %s105 = scalar_lea.vmem [#allocation0], 65
    %v106 = vld [vmem:[%s105] ss:$8 sm:$0xf]
    %s107 = scalar_lea.vmem [#allocation0], 65
    %v108 = vld [vmem:[%s107] ss:$8 sm:$0xf0]
    %vm109 = vcmask 1047556
    %v110 = vsel %vm109, %v108, %v106
    %111 = vrot.lane.b32.xlu0 %v110, 32
    %v112 = vpop.permute.xlu0 %111
    %vm113 = vcmask 523520
    %s114 = scalar_lea.vmem %s1, 8
    %115 = vst.msk [vmem:[%s114] sm:$0xff] %vm113, %v112

// kernel: llama_forward.1
$region0: #{llama_forward.1}
  #allocation0 [shape = 'u32[]', space=smem, size = 0x4, offset = 0x4, fixed_abs, tag = 'smem constant byte address 0x4 - core index']
  #allocation1 [shape = 'u32[144,128]{1,0:T(1,128)}', space=vmem, size = 0x12000, scoped, tag = 'internal scratch']
  #allocation2 [shape = 'f32[16,128]{1,0:T(8,128)}', space=vmem, size = 0x2000, scoped, tag = 'scratch operand']
  #allocation3 [shape = 'f32[16,128]{1,0:T(8,128)}', space=vmem, size = 0x2000, scoped, tag = 'scratch operand']
  %s0 = inlined_call_operand.vmem [shape: f32[16,128], index: 0, kind: input, shape index: {}]
  %s1 = inlined_call_operand.vmem [shape: f32[16,256], index: 1, kind: input, shape index: {}]
  %s2 = inlined_call_operand.vmem [shape: f32[16,256], index: 2, kind: input, shape index: {}]
  %s3 = inlined_call_operand.vmem [shape: f32[16,256], index: 3, kind: input, shape index: {}]
  %s4 = inlined_call_operand.vmem [shape: f32[2,1,128], index: 4, kind: input, shape index: {}]
  %s5 = inlined_call_operand.vmem [shape: f32[2,1,128], index: 5, kind: input, shape index: {}]
  %s6 = inlined_call_operand.vmem [shape: bf16[2,256,128], index: 6, kind: input, shape index: {}]
  %s7 = inlined_call_operand.vmem [shape: bf16[2,128,128], index: 7, kind: input, shape index: {}]
  %s8 = inlined_call_operand.vmem [shape: bf16[2,512,128], index: 8, kind: input, shape index: {}]
  %s9 = inlined_call_operand.vmem [shape: bf16[2,128,256], index: 9, kind: input, shape index: {}]
  %s10 = inlined_call_operand.vmem [shape: f32[1,128], index: 10, kind: input, shape index: {}]
  %s11 = inlined_call_operand.hbm [shape: f32[16,128], index: 11, kind: output, shape index: {}]
  %s12 = sld [smem:[#allocation0]]
  $region85: #{llama_forward.1} parent=0
    _
  %s14 = ssub.s32 1, %s12
  %s15 = scalar_select 0, %s14, %s12
  $region1: #{llama_forward.1} parent=0
    #allocation4 [shape = 'u8[8192]{0}', space=vmem, size = 0x2000, scoped, tag = 'output window, operand 0, single buffered']
    #allocation5 [shape = 's32[2]{0}', space=sflag, size = 0x8, scoped, tag = 'scoped memory for llama_forward.1']
    %16 = vsyncpa [#allocation5], 0
    loop: start=0, step=1, limit=4
    $region2: #{llama_forward.1} parent=1 // loop_pre_header
      _
    $region3: #{llama_forward.1} parent=1 // loop_header
      %s18 = sphi 0, %s22
      %p19 = scmp.ge.s32.totalorder %s18, 4
      %s26 = sphi 0, %s26
      %s28 = sphi 0, %s26
      %s29 = sphi 0, %s28
      %s43 = sphi 0, %s29
      %s47 = sphi 0, %s47
      %s49 = sphi 0, %s47
      %s50 = sphi 0, %s49
      %s64 = sphi 0, %s50
      %s68 = sphi 0, %s68
      %s70 = sphi 0, %s68
      %s71 = sphi 0, %s70
      %s85 = sphi 0, %s71
      %s89 = sphi 0, %s89
      %s91 = sphi 0, %s89
      %s92 = sphi 0, %s91
      %s106 = sphi 0, %s92
      %s112 = sphi 0, %s114
      %s115 = sphi 0, %s112
      %s116 = sphi 0, %s115
      %s132 = sphi 0, %s116
      %s138 = sphi 0, %s140
      %s141 = sphi 0, %s138
      %s142 = sphi 0, %s141
      %s158 = sphi 0, %s142
      %s164 = sphi 0, %s166
      %s167 = sphi 0, %s164
      %s168 = sphi 0, %s167
      %s184 = sphi 0, %s168
      %s190 = sphi 0, %s192
      %s193 = sphi 0, %s190
      %s194 = sphi 0, %s193
      %s210 = sphi 0, %s194
      %s216 = sphi 0, %s218
      %s219 = sphi 0, %s216
      %s220 = sphi 0, %s219
      %s236 = sphi 0, %s220
      %s242 = sphi 0, %s244
      %s245 = sphi 0, %s242
      %s246 = sphi 0, %s245
      %s262 = sphi 0, %s246
      %s266 = sphi 0, %s266
      %s268 = sphi 0, %s266
      %s269 = sphi 0, %s268
      %s283 = sphi 0, %s269
      %s287 = sphi 0, %s287
      %s289 = sphi 0, %s287
      %s290 = sphi 0, %s289
      %s304 = sphi 0, %s290
    $region4: #{llama_forward.1} parent=1 // loop_header_branch
      %21 = sbr.rel (%p19) target = $region8
    $region5: #{llama_forward.1} parent=1 // loop_body
      %s23 = ssub.s32 %s18, 1
      %s24 = ssub.s32 %s18, 2
      %s25 = sadd.s32 %s18, 1
      %s27 = sadd.s32 %s26, 1
      %p30 = scmp.eq.s32.totalorder %s18, 1
      %p31 = scmp.ne.s32.totalorder %s26, %s28
      %p32 = scmp.eq.s32.totalorder %s18, 0
      %p33 = por %p31, %p32
      %p34 = scmp.ne.s32.totalorder %s26, %s28
      %p35 = scmp.eq.s32.totalorder %s23, 1
      %p36 = por %p34, %p35
      %p37 = scmp.ne.s32.totalorder %s28, %s29
      %p38 = scmp.eq.s32.totalorder %s23, 0
      %p39 = por %p37, %p38
      %p40 = scmp.ne.s32.totalorder %s28, %s29
      %p41 = scmp.eq.s32.totalorder %s24, 1
      %p42 = por %p40, %p41
      %p44 = scmp.ne.s32.totalorder %s29, %s43
      %p45 = scmp.eq.s32.totalorder %s24, 0
      %p46 = por %p44, %p45
      %s48 = sadd.s32 %s47, 1
      %p51 = scmp.eq.s32.totalorder %s18, 1
      %p52 = scmp.ne.s32.totalorder %s47, %s49
      %p53 = scmp.eq.s32.totalorder %s18, 0
      %p54 = por %p52, %p53
      %p55 = scmp.ne.s32.totalorder %s47, %s49
      %p56 = scmp.eq.s32.totalorder %s23, 1
      %p57 = por %p55, %p56
      %p58 = scmp.ne.s32.totalorder %s49, %s50
      %p59 = scmp.eq.s32.totalorder %s23, 0
      %p60 = por %p58, %p59
      %p61 = scmp.ne.s32.totalorder %s49, %s50
      %p62 = scmp.eq.s32.totalorder %s24, 1
      %p63 = por %p61, %p62
      %p65 = scmp.ne.s32.totalorder %s50, %s64
      %p66 = scmp.eq.s32.totalorder %s24, 0
      %p67 = por %p65, %p66
      %s69 = sadd.s32 %s68, 1
      %p72 = scmp.eq.s32.totalorder %s18, 1
      %p73 = scmp.ne.s32.totalorder %s68, %s70
      %p74 = scmp.eq.s32.totalorder %s18, 0
      %p75 = por %p73, %p74
      %p76 = scmp.ne.s32.totalorder %s68, %s70
      %p77 = scmp.eq.s32.totalorder %s23, 1
      %p78 = por %p76, %p77
      %p79 = scmp.ne.s32.totalorder %s70, %s71
      %p80 = scmp.eq.s32.totalorder %s23, 0
      %p81 = por %p79, %p80
      %p82 = scmp.ne.s32.totalorder %s70, %s71
      %p83 = scmp.eq.s32.totalorder %s24, 1
      %p84 = por %p82, %p83
      %p86 = scmp.ne.s32.totalorder %s71, %s85
      %p87 = scmp.eq.s32.totalorder %s24, 0
      %p88 = por %p86, %p87
      %s90 = sadd.s32 %s89, 1
      %p93 = scmp.eq.s32.totalorder %s18, 1
      %p94 = scmp.ne.s32.totalorder %s89, %s91
      %p95 = scmp.eq.s32.totalorder %s18, 0
      %p96 = por %p94, %p95
      %p97 = scmp.ne.s32.totalorder %s89, %s91
      %p98 = scmp.eq.s32.totalorder %s23, 1
      %p99 = por %p97, %p98
      %p100 = scmp.ne.s32.totalorder %s91, %s92
      %p101 = scmp.eq.s32.totalorder %s23, 0
      %p102 = por %p100, %p101
      %p103 = scmp.ne.s32.totalorder %s91, %s92
      %p104 = scmp.eq.s32.totalorder %s24, 1
      %p105 = por %p103, %p104
      %p107 = scmp.ne.s32.totalorder %s92, %s106
      %p108 = scmp.eq.s32.totalorder %s24, 0
      %p109 = por %p107, %p108
      %s110 = ssub.s32 %s18, %s25
      %p111 = scmp.eq.s32.totalorder %s110, 0
      %s113 = sadd.s32 %s112, 1
      %s114 = scalar_select %p111, %s112, %s113
      %p117 = pneg %p111
      %p118 = scmp.eq.s32.totalorder %s18, 1
      %p119 = por %p117, %p118
      %p120 = scmp.ne.s32.totalorder %s112, %s115
      %p121 = scmp.eq.s32.totalorder %s18, 0
      %p122 = por %p120, %p121
      %p123 = scmp.ne.s32.totalorder %s112, %s115
      %p124 = scmp.eq.s32.totalorder %s23, 1
      %p125 = por %p123, %p124
      %p126 = scmp.ne.s32.totalorder %s115, %s116
      %p127 = scmp.eq.s32.totalorder %s23, 0
      %p128 = por %p126, %p127
      %p129 = scmp.ne.s32.totalorder %s115, %s116
      %p130 = scmp.eq.s32.totalorder %s24, 1
      %p131 = por %p129, %p130
      %p133 = scmp.ne.s32.totalorder %s116, %s132
      %p134 = scmp.eq.s32.totalorder %s24, 0
      %p135 = por %p133, %p134
      %s136 = ssub.s32 %s18, %s25
      %p137 = scmp.eq.s32.totalorder %s136, 0
      %s139 = sadd.s32 %s138, 1
      %s140 = scalar_select %p137, %s138, %s139
      %p143 = pneg %p137
      %p144 = scmp.eq.s32.totalorder %s18, 1
      %p145 = por %p143, %p144
      %p146 = scmp.ne.s32.totalorder %s138, %s141
      %p147 = scmp.eq.s32.totalorder %s18, 0
      %p148 = por %p146, %p147
      %p149 = scmp.ne.s32.totalorder %s138, %s141
      %p150 = scmp.eq.s32.totalorder %s23, 1
      %p151 = por %p149, %p150
      %p152 = scmp.ne.s32.totalorder %s141, %s142
      %p153 = scmp.eq.s32.totalorder %s23, 0
      %p154 = por %p152, %p153
      %p155 = scmp.ne.s32.totalorder %s141, %s142
      %p156 = scmp.eq.s32.totalorder %s24, 1
      %p157 = por %p155, %p156
      %p159 = scmp.ne.s32.totalorder %s142, %s158
      %p160 = scmp.eq.s32.totalorder %s24, 0
      %p161 = por %p159, %p160
      %s162 = ssub.s32 %s18, %s25
      %p163 = scmp.eq.s32.totalorder %s162, 0
      %s165 = sadd.s32 %s164, 1
      %s166 = scalar_select %p163, %s164, %s165
      %p169 = pneg %p163
      %p170 = scmp.eq.s32.totalorder %s18, 1
      %p171 = por %p169, %p170
      %p172 = scmp.ne.s32.totalorder %s164, %s167
      %p173 = scmp.eq.s32.totalorder %s18, 0
      %p174 = por %p172, %p173
      %p175 = scmp.ne.s32.totalorder %s164, %s167
      %p176 = scmp.eq.s32.totalorder %s23, 1
      %p177 = por %p175, %p176
      %p178 = scmp.ne.s32.totalorder %s167, %s168
      %p179 = scmp.eq.s32.totalorder %s23, 0
      %p180 = por %p178, %p179
      %p181 = scmp.ne.s32.totalorder %s167, %s168
      %p182 = scmp.eq.s32.totalorder %s24, 1
      %p183 = por %p181, %p182
      %p185 = scmp.ne.s32.totalorder %s168, %s184
      %p186 = scmp.eq.s32.totalorder %s24, 0
      %p187 = por %p185, %p186
      %s188 = ssub.s32 %s18, %s25
      %p189 = scmp.eq.s32.totalorder %s188, 0
      %s191 = sadd.s32 %s190, 1
      %s192 = scalar_select %p189, %s190, %s191
      %p195 = pneg %p189
      %p196 = scmp.eq.s32.totalorder %s18, 1
      %p197 = por %p195, %p196
      %p198 = scmp.ne.s32.totalorder %s190, %s193
      %p199 = scmp.eq.s32.totalorder %s18, 0
      %p200 = por %p198, %p199
      %p201 = scmp.ne.s32.totalorder %s190, %s193
      %p202 = scmp.eq.s32.totalorder %s23, 1
      %p203 = por %p201, %p202
      %p204 = scmp.ne.s32.totalorder %s193, %s194
      %p205 = scmp.eq.s32.totalorder %s23, 0
      %p206 = por %p204, %p205
      %p207 = scmp.ne.s32.totalorder %s193, %s194
      %p208 = scmp.eq.s32.totalorder %s24, 1
      %p209 = por %p207, %p208
      %p211 = scmp.ne.s32.totalorder %s194, %s210
      %p212 = scmp.eq.s32.totalorder %s24, 0
      %p213 = por %p211, %p212
      %s214 = ssub.s32 %s18, %s25
      %p215 = scmp.eq.s32.totalorder %s214, 0
      %s217 = sadd.s32 %s216, 1
      %s218 = scalar_select %p215, %s216, %s217
      %p221 = pneg %p215
      %p222 = scmp.eq.s32.totalorder %s18, 1
      %p223 = por %p221, %p222
      %p224 = scmp.ne.s32.totalorder %s216, %s219
      %p225 = scmp.eq.s32.totalorder %s18, 0
      %p226 = por %p224, %p225
      %p227 = scmp.ne.s32.totalorder %s216, %s219
      %p228 = scmp.eq.s32.totalorder %s23, 1
      %p229 = por %p227, %p228
      %p230 = scmp.ne.s32.totalorder %s219, %s220
      %p231 = scmp.eq.s32.totalorder %s23, 0
      %p232 = por %p230, %p231
      %p233 = scmp.ne.s32.totalorder %s219, %s220
      %p234 = scmp.eq.s32.totalorder %s24, 1
      %p235 = por %p233, %p234
      %p237 = scmp.ne.s32.totalorder %s220, %s236
      %p238 = scmp.eq.s32.totalorder %s24, 0
      %p239 = por %p237, %p238
      %s240 = ssub.s32 %s18, %s25
      %p241 = scmp.eq.s32.totalorder %s240, 0
      %s243 = sadd.s32 %s242, 1
      %s244 = scalar_select %p241, %s242, %s243
      %p247 = pneg %p241
      %p248 = scmp.eq.s32.totalorder %s18, 1
      %p249 = por %p247, %p248
      %p250 = scmp.ne.s32.totalorder %s242, %s245
      %p251 = scmp.eq.s32.totalorder %s18, 0
      %p252 = por %p250, %p251
      %p253 = scmp.ne.s32.totalorder %s242, %s245
      %p254 = scmp.eq.s32.totalorder %s23, 1
      %p255 = por %p253, %p254
      %p256 = scmp.ne.s32.totalorder %s245, %s246
      %p257 = scmp.eq.s32.totalorder %s23, 0
      %p258 = por %p256, %p257
      %p259 = scmp.ne.s32.totalorder %s245, %s246
      %p260 = scmp.eq.s32.totalorder %s24, 1
      %p261 = por %p259, %p260
      %p263 = scmp.ne.s32.totalorder %s246, %s262
      %p264 = scmp.eq.s32.totalorder %s24, 0
      %p265 = por %p263, %p264
      %s267 = sadd.s32 %s266, 1
      %p270 = scmp.eq.s32.totalorder %s18, 1
      %p271 = scmp.ne.s32.totalorder %s266, %s268
      %p272 = scmp.eq.s32.totalorder %s18, 0
      %p273 = por %p271, %p272
      %p274 = scmp.ne.s32.totalorder %s266, %s268
      %p275 = scmp.eq.s32.totalorder %s23, 1
      %p276 = por %p274, %p275
      %p277 = scmp.ne.s32.totalorder %s268, %s269
      %p278 = scmp.eq.s32.totalorder %s23, 0
      %p279 = por %p277, %p278
      %p280 = scmp.ne.s32.totalorder %s268, %s269
      %p281 = scmp.eq.s32.totalorder %s24, 1
      %p282 = por %p280, %p281
      %p284 = scmp.ne.s32.totalorder %s269, %s283
      %p285 = scmp.eq.s32.totalorder %s24, 0
      %p286 = por %p284, %p285
      %s288 = sadd.s32 %s287, 1
      %p291 = scmp.eq.s32.totalorder %s18, 1
      %p292 = scmp.ne.s32.totalorder %s287, %s289
      %p293 = scmp.eq.s32.totalorder %s18, 0
      %p294 = por %p292, %p293
      %p295 = scmp.ne.s32.totalorder %s287, %s289
      %p296 = scmp.eq.s32.totalorder %s23, 1
      %p297 = por %p295, %p296
      %p298 = scmp.ne.s32.totalorder %s289, %s290
      %p299 = scmp.eq.s32.totalorder %s23, 0
      %p300 = por %p298, %p299
      %p301 = scmp.ne.s32.totalorder %s289, %s290
      %p302 = scmp.eq.s32.totalorder %s24, 1
      %p303 = por %p301, %p302
      %p305 = scmp.ne.s32.totalorder %s290, %s304
      %p306 = scmp.eq.s32.totalorder %s24, 0
      %p307 = por %p305, %p306
      %p308 = scmp.le.s32.totalorder 1, %s18
      %p309 = scmp.lt.s32.totalorder %s18, 3
      %p310 = pnand %p308, %p309
      %p311 = pneg %p310
      // Predicated region
      $region9: #{llama_forward.1} parent=5 // pred_check
        _
      $region10: #{llama_forward.1} parent=5 // pred_check_branch
        %313 = sbr.rel (%p310) target = $region12
      $region11: #{llama_forward.1} parent=5 // pred_region
        %s314 = ssub.s32 %s18, 1
        // Predicated region
        $region13: #{llama_forward.1} parent=11 // pred_check
          %p315 = pneg %p39
        $region14: #{llama_forward.1} parent=11 // pred_check_branch
          %317 = sbr.rel (%p315) target = $region16
        $region15: #{llama_forward.1} parent=11 // pred_region
          _
        $region16: #{llama_forward.1} parent=11 // pred_fallthru
          _
        // Predicated region
        $region17: #{llama_forward.1} parent=11 // pred_check
          %p318 = pneg %p60
        $region18: #{llama_forward.1} parent=11 // pred_check_branch
          %320 = sbr.rel (%p318) target = $region20
        $region19: #{llama_forward.1} parent=11 // pred_region
          _
        $region20: #{llama_forward.1} parent=11 // pred_fallthru
          _
        // Predicated region
        $region21: #{llama_forward.1} parent=11 // pred_check
          %p321 = pneg %p81
        $region22: #{llama_forward.1} parent=11 // pred_check_branch
          %323 = sbr.rel (%p321) target = $region24
        $region23: #{llama_forward.1} parent=11 // pred_region
          _
        $region24: #{llama_forward.1} parent=11 // pred_fallthru
          _
        // Predicated region
        $region25: #{llama_forward.1} parent=11 // pred_check
          %p324 = pneg %p102
        $region26: #{llama_forward.1} parent=11 // pred_check_branch
          %326 = sbr.rel (%p324) target = $region28
        $region27: #{llama_forward.1} parent=11 // pred_region
          _
        $region28: #{llama_forward.1} parent=11 // pred_fallthru
          _
        // Predicated region
        $region29: #{llama_forward.1} parent=11 // pred_check
          %p327 = pneg %p279
        $region30: #{llama_forward.1} parent=11 // pred_check_branch
          %329 = sbr.rel (%p327) target = $region32
        $region31: #{llama_forward.1} parent=11 // pred_region
          _
        $region32: #{llama_forward.1} parent=11 // pred_fallthru
          _
      $region12: #{llama_forward.1} parent=5 // pred_fallthru
        _
      %p330 = scmp.lt.s32.totalorder %s18, 2
      // Predicated region
      $region33: #{llama_forward.1} parent=5 // pred_check
        %p331 = pneg %p330
      $region34: #{llama_forward.1} parent=5 // pred_check_branch
        %333 = sbr.rel (%p331) target = $region36
      $region35: #{llama_forward.1} parent=5 // pred_region
        // Predicated region
        $region37: #{llama_forward.1} parent=35 // pred_check
          %p334 = pneg %p122
        $region38: #{llama_forward.1} parent=35 // pred_check_branch
          %336 = sbr.rel (%p334) target = $region40
        $region39: #{llama_forward.1} parent=35 // pred_region
          %p337 = scmp.lt.s32.totalorder %s18, 1
          %s338 = scalar_select %p337, %s18, 1
          %s339 = scalar_lea.vmem %s4, %s338
        $region40: #{llama_forward.1} parent=35 // pred_fallthru
          _
        // Predicated region
        $region41: #{llama_forward.1} parent=35 // pred_check
          %p340 = pneg %p148
        $region42: #{llama_forward.1} parent=35 // pred_check_branch
          %342 = sbr.rel (%p340) target = $region44
        $region43: #{llama_forward.1} parent=35 // pred_region
          %p343 = scmp.lt.s32.totalorder %s18, 1
          %s344 = scalar_select %p343, %s18, 1
          %s345 = scalar_lea.vmem %s5, %s344
        $region44: #{llama_forward.1} parent=35 // pred_fallthru
          _
        // Predicated region
        $region45: #{llama_forward.1} parent=35 // pred_check
          %p346 = pneg %p174
        $region46: #{llama_forward.1} parent=35 // pred_check_branch
          %348 = sbr.rel (%p346) target = $region48
        $region47: #{llama_forward.1} parent=35 // pred_region
          %p349 = scmp.lt.s32.totalorder %s18, 1
          %s350 = scalar_select %p349, %s18, 1
          %s351 = smul.addr %s350, 32
          %s352 = smul.addr %s351, 4
          %s353 = scalar_lea.vmem %s6, %s352
        $region48: #{llama_forward.1} parent=35 // pred_fallthru
          _
        // Predicated region
        $region49: #{llama_forward.1} parent=35 // pred_check
          %p354 = pneg %p200
        $region50: #{llama_forward.1} parent=35 // pred_check_branch
          %356 = sbr.rel (%p354) target = $region52
        $region51: #{llama_forward.1} parent=35 // pred_region
          %p357 = scmp.lt.s32.totalorder %s18, 1
          %s358 = scalar_select %p357, %s18, 1
          %s359 = smul.addr %s358, 16
          %s360 = smul.addr %s359, 4
          %s361 = scalar_lea.vmem %s7, %s360
        $region52: #{llama_forward.1} parent=35 // pred_fallthru
          _
        // Predicated region
        $region53: #{llama_forward.1} parent=35 // pred_check
          %p362 = pneg %p226
        $region54: #{llama_forward.1} parent=35 // pred_check_branch
          %364 = sbr.rel (%p362) target = $region56
        $region55: #{llama_forward.1} parent=35 // pred_region
          %p365 = scmp.lt.s32.totalorder %s18, 1
          %s366 = scalar_select %p365, %s18, 1
          %s367 = smul.addr %s366, 64
          %s368 = smul.addr %s367, 4
          %s369 = scalar_lea.vmem %s8, %s368
        $region56: #{llama_forward.1} parent=35 // pred_fallthru
          _
        // Predicated region
        $region57: #{llama_forward.1} parent=35 // pred_check
          %p370 = pneg %p252
        $region58: #{llama_forward.1} parent=35 // pred_check_branch
          %372 = sbr.rel (%p370) target = $region60
        $region59: #{llama_forward.1} parent=35 // pred_region
          %p373 = scmp.lt.s32.totalorder %s18, 1
          %s374 = scalar_select %p373, %s18, 1
          %s375 = smul.addr %s374, 32
          %s376 = smul.addr %s375, 4
          %s377 = scalar_lea.vmem %s9, %s376
        $region60: #{llama_forward.1} parent=35 // pred_fallthru
          _
      $region36: #{llama_forward.1} parent=5 // pred_fallthru
        _
      %p378 = scmp.le.s32.totalorder 1, %s18
      %p379 = scmp.lt.s32.totalorder %s18, 3
      %p380 = pnand %p378, %p379
      %p381 = pneg %p380
      // Predicated region
      $region61: #{llama_forward.1} parent=5 // pred_check
        _
      $region62: #{llama_forward.1} parent=5 // pred_check_branch
        %383 = sbr.rel (%p380) target = $region64
      $region63: #{llama_forward.1} parent=5 // pred_region
        %s384 = ssub.s32 %s18, 1
        %p385 = pneg %p39
        %p386 = pneg %p36
        %p387 = pneg %p60
        %p388 = pneg %p57
        %p389 = pneg %p81
        %p390 = pneg %p78
        %p391 = pneg %p102
        %p392 = pneg %p99
        %p393 = scmp.lt.s32.totalorder %s23, 1
        %s394 = scalar_select %p393, %s23, 1
        %s395 = scalar_lea.vmem %s4, %s394
        %p396 = pneg %p128
        %p397 = pneg %p125
        %p398 = scmp.lt.s32.totalorder %s23, 1
        %s399 = scalar_select %p398, %s23, 1
        %s400 = scalar_lea.vmem %s5, %s399
        %p401 = pneg %p154
        %p402 = pneg %p151
        %p403 = scmp.lt.s32.totalorder %s23, 1
        %s404 = scalar_select %p403, %s23, 1
        %s405 = smul.addr %s404, 32
        %s406 = smul.addr %s405, 4
        %s407 = scalar_lea.vmem %s6, %s406
        %p408 = pneg %p180
        %p409 = pneg %p177
        %p410 = scmp.lt.s32.totalorder %s23, 1
        %s411 = scalar_select %p410, %s23, 1
        %s412 = smul.addr %s411, 16
        %s413 = smul.addr %s412, 4
        %s414 = scalar_lea.vmem %s7, %s413
        %p415 = pneg %p206
        %p416 = pneg %p203
        %p417 = scmp.lt.s32.totalorder %s23, 1
        %s418 = scalar_select %p417, %s23, 1
        %s419 = smul.addr %s418, 64
        %s420 = smul.addr %s419, 4
        %s421 = scalar_lea.vmem %s8, %s420
        %p422 = pneg %p232
        %p423 = pneg %p229
        %p424 = scmp.lt.s32.totalorder %s23, 1
        %s425 = scalar_select %p424, %s23, 1
        %s426 = smul.addr %s425, 32
        %s427 = smul.addr %s426, 4
        %s428 = scalar_lea.vmem %s9, %s427
        %p429 = pneg %p258
        %p430 = pneg %p255
        %p431 = pneg %p279
        %p432 = pneg %p276
        %p433 = pneg %p300
        %p434 = pneg %p297
        %p435 = scmp.lt.s32.totalorder %s23, 1
        %s436 = scalar_select %p435, %s23, 1
        %s437 = scalar_lea.vmem %s4, %s436
        %p438 = scmp.lt.s32.totalorder %s23, 1
        %s439 = scalar_select %p438, %s23, 1
        %s440 = scalar_lea.vmem %s5, %s439
        %p441 = scmp.lt.s32.totalorder %s23, 1
        %s442 = scalar_select %p441, %s23, 1
        %s443 = smul.addr %s442, 32
        %s444 = smul.addr %s443, 4
        %s445 = scalar_lea.vmem %s6, %s444
        %p446 = scmp.lt.s32.totalorder %s23, 1
        %s447 = scalar_select %p446, %s23, 1
        %s448 = smul.addr %s447, 16
        %s449 = smul.addr %s448, 4
        %s450 = scalar_lea.vmem %s7, %s449
        %p451 = scmp.lt.s32.totalorder %s23, 1
        %s452 = scalar_select %p451, %s23, 1
        %s453 = smul.addr %s452, 64
        %s454 = smul.addr %s453, 4
        %s455 = scalar_lea.vmem %s8, %s454
        %p456 = scmp.lt.s32.totalorder %s23, 1
        %s457 = scalar_select %p456, %s23, 1
        %s458 = smul.addr %s457, 32
        %s459 = smul.addr %s458, 4
        %s460 = scalar_lea.vmem %s9, %s459
        %p462 = scmp.eq.s32.totalorder %s23, 0
        // Predicated region
        $region65: #{llama_forward.1} parent=63 // pred_check
          %p463 = pneg %p462
        $region66: #{llama_forward.1} parent=63 // pred_check_branch
          %465 = sbr.rel (%p463) target = $region68
        $region67: #{llama_forward.1} parent=63 // pred_region
          %v466 = vld [vmem:[%s0] sm:$0xff]
          %v467 = vld [vmem:[%s0 + $0x8] sm:$0xff]
          %468 = vst [vmem:[#allocation2] sm:$0xff] %v466
          %469 = vst [vmem:[#allocation2 + $0x8] sm:$0xff] %v467
          %470 = vst [vmem:[#allocation3] sm:$0xff] 0.0
          %471 = vst [vmem:[#allocation3 + $0x8] sm:$0xff] 0.0
        $region68: #{llama_forward.1} parent=63 // pred_fallthru
          _
        %v472 = vld [vmem:[#allocation2] sm:$0xff]
        %v473 = vld [vmem:[#allocation2 + $0x8] sm:$0xff]
        %v474 = vld [vmem:[#allocation3] sm:$0xff]
        %v475 = vld [vmem:[#allocation3 + $0x8] sm:$0xff]
        %v476 = vadd.f32 %v472, %v474
        %v477 = vadd.f32 %v473, %v475
        %v478 = vld [vmem:[%s437] sm:$0x1]
        %v479 = vmul.f32 %v476, %v476
        %v480 = vmul.f32 %v477, %v477
        %481 = vadd.xlane.f32.xlu0 %v479
        %v482 = vpop.xlane.xlu0 %481
        %483 = vadd.xlane.f32.xlu0 %v480
        %v484 = vpop.xlane.xlu0 %483
        %v485 = vrcp.pop 128.0
        %v486 = vmul.f32 %v482, %v485
        %v487 = vmul.f32 %v484, %v485
        %v488 = vadd.f32 %v486, 1e-06
        %v489 = vadd.f32 %v487, 1e-06
        %v490 = vrsqrt.pop %v488
        %v491 = vrsqrt.pop %v489
        %v492 = vmul.f32 %v476, %v490
        %v493 = vmul.f32 %v477, %v491
        %v495 = vlaneseq
        %v496 = vshrl.u32 %v495, 7
        %v497 = vsub.s32 0, %v496
        %v498 = vrot.slane %v478, %v497
        %v500 = vmul.f32 %v492, %v498
        %v501 = vmul.f32 %v493, %v498
        %v502 = vld [vmem:[%s445] sm:$0xf]
        %v503 = vld [vmem:[%s445 + $0x4] sm:$0xf]
        %v504 = vld [vmem:[%s445 + $0x8] sm:$0xf]
        %v505 = vld [vmem:[%s445 + $0xc] sm:$0xf]
        %v506 = vld [vmem:[%s445 + $0x10] sm:$0xf]
        %v507 = vld [vmem:[%s445 + $0x14] sm:$0xf]
        %v508 = vld [vmem:[%s445 + $0x18] sm:$0xf]
        %v509 = vld [vmem:[%s445 + $0x1c] sm:$0xf]
        %v510 = vld [vmem:[%s445 + $0x20] sm:$0xf]
        %v511 = vld [vmem:[%s445 + $0x24] sm:$0xf]
        %v512 = vld [vmem:[%s445 + $0x28] sm:$0xf]
        %v513 = vld [vmem:[%s445 + $0x2c] sm:$0xf]
        %v514 = vld [vmem:[%s445 + $0x30] sm:$0xf]
        %v515 = vld [vmem:[%s445 + $0x34] sm:$0xf]
        %v516 = vld [vmem:[%s445 + $0x38] sm:$0xf]
        %v517 = vld [vmem:[%s445 + $0x3c] sm:$0xf]
        %v518 = vld [vmem:[%s445 + $0x40] sm:$0xf]
        %v519 = vld [vmem:[%s445 + $0x44] sm:$0xf]
        %v520 = vld [vmem:[%s445 + $0x48] sm:$0xf]
        %v521 = vld [vmem:[%s445 + $0x4c] sm:$0xf]
        %v522 = vld [vmem:[%s445 + $0x50] sm:$0xf]
        %v523 = vld [vmem:[%s445 + $0x54] sm:$0xf]
        %v524 = vld [vmem:[%s445 + $0x58] sm:$0xf]
        %v525 = vld [vmem:[%s445 + $0x5c] sm:$0xf]
        %v526 = vld [vmem:[%s445 + $0x60] sm:$0xf]
        %v527 = vld [vmem:[%s445 + $0x64] sm:$0xf]
        %v528 = vld [vmem:[%s445 + $0x68] sm:$0xf]
        %v529 = vld [vmem:[%s445 + $0x6c] sm:$0xf]
        %v530 = vld [vmem:[%s445 + $0x70] sm:$0xf]
        %v531 = vld [vmem:[%s445 + $0x74] sm:$0xf]
        %v532 = vld [vmem:[%s445 + $0x78] sm:$0xf]
        %v533 = vld [vmem:[%s445 + $0x7c] sm:$0xf]
        %v534 = vpack.c.bf16 %v501, %v500
        %v567 = vunpack.c.l.b16 %v502
        %v568 = vunpack.c.l.b16 %v503
        %v569 = vunpack.c.l.b16 %v504
        %v570 = vunpack.c.l.b16 %v505
        %v571 = vunpack.c.l.b16 %v506
        %v572 = vunpack.c.l.b16 %v507
        %v573 = vunpack.c.l.b16 %v508
        %v574 = vunpack.c.l.b16 %v509
        %v575 = vunpack.c.l.b16 %v510
        %v576 = vunpack.c.l.b16 %v511
        %v577 = vunpack.c.l.b16 %v512
        %v578 = vunpack.c.l.b16 %v513
        %v579 = vunpack.c.l.b16 %v514
        %v580 = vunpack.c.l.b16 %v515
        %v581 = vunpack.c.l.b16 %v516
        %v582 = vunpack.c.l.b16 %v517
        %v583 = vunpack.c.l.b16 %v518
        %v584 = vunpack.c.l.b16 %v519
        %v585 = vunpack.c.l.b16 %v520
        %v586 = vunpack.c.l.b16 %v521
        %v587 = vunpack.c.l.b16 %v522
        %v588 = vunpack.c.l.b16 %v523
        %v589 = vunpack.c.l.b16 %v524
        %v590 = vunpack.c.l.b16 %v525
        %v591 = vunpack.c.l.b16 %v526
        %v592 = vunpack.c.l.b16 %v527
        %v593 = vunpack.c.l.b16 %v528
        %v594 = vunpack.c.l.b16 %v529
        %v595 = vunpack.c.l.b16 %v530
        %v596 = vunpack.c.l.b16 %v531
        %v597 = vunpack.c.l.b16 %v532
        %v598 = vunpack.c.l.b16 %v533
        %v599 = vpack.c.b16 %v568, %v567
        %v600 = vpack.c.b16 %v570, %v569
        %v601 = vpack.c.b16 %v572, %v571
        %v602 = vpack.c.b16 %v574, %v573
        %v603 = vpack.c.b16 %v576, %v575
        %v604 = vpack.c.b16 %v578, %v577
        %v605 = vpack.c.b16 %v580, %v579
        %v606 = vpack.c.b16 %v582, %v581
        %v607 = vpack.c.b16 %v584, %v583
        %v608 = vpack.c.b16 %v586, %v585
        %v609 = vpack.c.b16 %v588, %v587
        %v610 = vpack.c.b16 %v590, %v589
        %v611 = vpack.c.b16 %v592, %v591
        %v612 = vpack.c.b16 %v594, %v593
        %v613 = vpack.c.b16 %v596, %v595
        %v614 = vpack.c.b16 %v598, %v597
        %631 = vmatprep.subr.bf16.mxu0 0
        %632 = vmatpush1.bf16.xpose.msra.mxu0 %v599
        %633 = vmatprep.subr.bf16.mxu0 0
        %634 = vmatpush1.bf16.xpose.msra.mxu0 %v600
        %635 = vmatprep.subr.bf16.mxu0 0
        %636 = vmatpush1.bf16.xpose.msra.mxu0 %v601
        %637 = vmatprep.subr.bf16.mxu0 0
        %638 = vmatpush1.bf16.xpose.msra.mxu0 %v602
        %639 = vmatprep.subr.bf16.mxu0 0
        %640 = vmatpush1.bf16.xpose.msra.mxu0 %v603
        %641 = vmatprep.subr.bf16.mxu0 0
        %642 = vmatpush1.bf16.xpose.msra.mxu0 %v604
        %643 = vmatprep.subr.bf16.mxu0 0
        %644 = vmatpush1.bf16.xpose.msra.mxu0 %v605
        %645 = vmatprep.subr.bf16.mxu0 0
        %646 = vmatpush1.bf16.xpose.msra.mxu0 %v606
        %647 = vmatprep.subr.bf16.mxu0 0
        %648 = vmatpush1.bf16.xpose.msra.mxu0 %v607
        %649 = vmatprep.subr.bf16.mxu0 0
        %650 = vmatpush1.bf16.xpose.msra.mxu0 %v608
        %651 = vmatprep.subr.bf16.mxu0 0
        %652 = vmatpush1.bf16.xpose.msra.mxu0 %v609
        %653 = vmatprep.subr.bf16.mxu0 0
        %654 = vmatpush1.bf16.xpose.msra.mxu0 %v610
        %655 = vmatprep.subr.bf16.mxu0 0
        %656 = vmatpush1.bf16.xpose.msra.mxu0 %v611
        %657 = vmatprep.subr.bf16.mxu0 0
        %658 = vmatpush1.bf16.xpose.msra.mxu0 %v612
        %659 = vmatprep.subr.bf16.mxu0 0
        %660 = vmatpush1.bf16.xpose.msra.mxu0 %v613
        %661 = vmatprep.subr.bf16.mxu0 0
        %662 = vmatpush1.bf16.xpose.msra.mxu0 %v614
        %663 = vmatprep.mubr.bf16.mxu0 0
        %664 = vmatmul.mubr.bf16.gmra.mrb[0].mxu0 %v534
        %v665 = vpop.f32.mrb[0].mxu0
        %v666 = vadd.f32 0.0, %v665
        %v667 = vpop.f32.mrb[0].mxu0
        %v668 = vadd.f32 0.0, %v667
        %v669 = vpop.f32.mrb[0].mxu0
        %v670 = vadd.f32 0.0, %v669
        %v671 = vpop.f32.mrb[0].mxu0
        %v672 = vadd.f32 0.0, %v671
        %673 = vdwg.mxu0
        %674 = vrot.lane.b32.xlu0 %v666, 112
        %v675 = vpop.permute.xlu0 %674
        %676 = vrot.lane.b32.xlu0 %v670, 112
        %v677 = vpop.permute.xlu0 %676
        %678 = vrot.lane.b32.xlu0 %v668, 112
        %v679 = vpop.permute.xlu0 %678
        %680 = vrot.lane.b32.xlu0 %v672, 112
        %v681 = vpop.permute.xlu0 %680
        %v682 = vlaneseq
        %v683 = vand.u32 %v682, 127
        %vm684 = vcmp.lt.s32.totalorder %v683, 112
        %v685 = vsel %vm684, %v675, %v679
        %v686 = vsel %vm684, %v677, %v681
        %v687 = vsel %vm684, %v679, %v675
        %v688 = vsel %vm684, %v681, %v677
        %689 = vrot.lane.b32.xlu0 %v666, 16
        %v690 = vpop.permute.xlu0 %689
        %691 = vrot.lane.b32.xlu0 %v670, 16
        %v692 = vpop.permute.xlu0 %691
        %693 = vrot.lane.b32.xlu0 %v668, 16
        %v694 = vpop.permute.xlu0 %693
        %695 = vrot.lane.b32.xlu0 %v672, 16
        %v696 = vpop.permute.xlu0 %695
        %vm697 = vcmp.lt.s32.totalorder %v683, 16
        %v698 = vsel %vm697, %v690, %v694
        %v699 = vsel %vm697, %v692, %v696
        %v700 = vsel %vm697, %v694, %v690
        %v701 = vsel %vm697, %v696, %v692
        %v702 = vld [vmem:[%s1] sm:$0xff]
        %v703 = vld [vmem:[%s1 + $0x8] sm:$0xff]
        %v704 = vld [vmem:[%s1 + $0x10] sm:$0xff]
        %v705 = vld [vmem:[%s1 + $0x18] sm:$0xff]
        %v706 = vmul.f32 %v666, %v702
        %v707 = vmul.f32 %v668, %v703
        %v708 = vmul.f32 %v670, %v704
        %v709 = vmul.f32 %v672, %v705
        %v710 = vld [vmem:[%s2] sm:$0xff]
        %v711 = vld [vmem:[%s2 + $0x8] sm:$0xff]
        %v712 = vld [vmem:[%s2 + $0x10] sm:$0xff]
        %v713 = vld [vmem:[%s2 + $0x18] sm:$0xff]
        %v714 = vmul.f32 %v685, %v710
        %v715 = vmul.f32 %v687, %v711
        %v716 = vmul.f32 %v686, %v712
        %v717 = vmul.f32 %v688, %v713
        %v718 = vadd.f32 %v706, %v714
        %v719 = vadd.f32 %v707, %v715
        %v720 = vadd.f32 %v708, %v716
        %v721 = vadd.f32 %v709, %v717
        %v722 = vld [vmem:[%s3] sm:$0xff]
        %v723 = vld [vmem:[%s3 + $0x8] sm:$0xff]
        %v724 = vld [vmem:[%s3 + $0x10] sm:$0xff]
        %v725 = vld [vmem:[%s3 + $0x18] sm:$0xff]
        %v726 = vmul.f32 %v700, %v722
        %v727 = vmul.f32 %v698, %v723
        %v728 = vmul.f32 %v701, %v724
        %v729 = vmul.f32 %v699, %v725
        %v730 = vadd.f32 %v718, %v726
        %v731 = vadd.f32 %v719, %v727
        %v732 = vadd.f32 %v720, %v728
        %v733 = vadd.f32 %v721, %v729
        %v734 = vlaneseq
        %v735 = vshrl.u32 %v734, 7
        %v736 = vadd.s32 %v735, 8
        %vm737 = vcmp.ge.s32.totalorder %v735, %v683
        %vm738 = vcmp.ge.s32.totalorder %v736, %v683
        %v739 = vsel %vm737, 0.0, -1e+30
        %v740 = vsel %vm738, 0.0, -1e+30
        %v741 = vpack.c.bf16 %v732, %v730
        %v742 = vpack.c.bf16 %v733, %v731
        %vm743 = vcmask 261120
        %v745 = vsel %vm743, %v741, 0
        %v748 = vsel %vm743, %v742, 0
        %750 = vmatprep.subr.bf16.mxu0 0
        %751 = vmatpush1.bf16.xpose.msra.mxu0 %v748
        %752 = vmatprep.subr.bf16.mxu0 0
        %753 = vmatpush1.bf16.xpose.msra.mxu0 0
        %754 = vmatprep.subr.bf16.mxu0 0
        %755 = vmatpush1.bf16.xpose.msra.mxu0 0
        %756 = vmatprep.subr.bf16.mxu0 0
        %757 = vmatpush1.bf16.xpose.msra.mxu0 0
        %758 = vmatprep.subr.bf16.mxu0 0
        %759 = vmatpush1.bf16.xpose.msra.mxu0 0
        %760 = vmatprep.subr.bf16.mxu0 0
        %761 = vmatpush1.bf16.xpose.msra.mxu0 0
        %762 = vmatprep.subr.bf16.mxu0 0
        %763 = vmatpush1.bf16.xpose.msra.mxu0 0
        %764 = vmatprep.subr.bf16.mxu0 0
        %765 = vmatpush1.bf16.xpose.msra.mxu0 0
        %766 = vmatprep.subr.bf16.mxu0 0
        %767 = vmatpush1.bf16.xpose.msra.mxu0 0
        %768 = vmatprep.subr.bf16.mxu0 0
        %769 = vmatpush1.bf16.xpose.msra.mxu0 0
        %770 = vmatprep.subr.bf16.mxu0 0
        %771 = vmatpush1.bf16.xpose.msra.mxu0 0
        %772 = vmatprep.subr.bf16.mxu0 0
        %773 = vmatpush1.bf16.xpose.msra.mxu0 0
        %774 = vmatprep.subr.bf16.mxu0 0
        %775 = vmatpush1.bf16.xpose.msra.mxu0 0
        %776 = vmatprep.subr.bf16.mxu0 0
        %777 = vmatpush1.bf16.xpose.msra.mxu0 0
        %778 = vmatprep.subr.bf16.mxu0 0
        %779 = vmatpush1.bf16.xpose.msra.mxu0 0
        %780 = vmatprep.subr.bf16.mxu0 0
        %781 = vmatpush1.bf16.xpose.msra.mxu0 0
        %782 = vmatprep.mubr.bf16.mxu0 0
        %783 = vmatmul.mubr.bf16.gmra.mrb[0].mxu0 %v745
        %v784 = vpop.f32.mrb[0].mxu0
        %v785 = vadd.f32 %v739, %v784
        %v786 = vpop.f32.mrb[0].mxu0
        %v787 = vpop.f32.mrb[0].mxu0
        %v788 = vadd.f32 %v740, %v787
        %v789 = vpop.f32.mrb[0].mxu0
        %790 = vdwg.mxu0
        %vm791 = vcmask 130048
        %v792 = vsel %vm791, %v785, -inf
        %793 = vmax.xlane.f32.xlu0 %v792
        %v794 = vpop.xlane.xlu0 %793
        %v795 = vsel %vm791, %v788, -inf
        %796 = vmax.xlane.f32.xlu0 %v795
        %v797 = vpop.xlane.xlu0 %796
        %v798 = vsub.f32 %v785, %v794
        %v799 = vsub.f32 %v788, %v797
        %v800 = vmul.f32 %v798, 1.442695
        %v801 = vpow.pop %v800
        %v802 = vmul.f32 %v799, 1.442695
        %v803 = vpow.pop %v802
        %v804 = vsel %vm791, %v801, 0.0
        %805 = vadd.xlane.f32.xlu0 %v804
        %v806 = vpop.xlane.xlu0 %805
        %v807 = vsel %vm791, %v803, 0.0
        %808 = vadd.xlane.f32.xlu0 %v807
        %v809 = vpop.xlane.xlu0 %808
        %v810 = vrcp.pop %v806
        %v811 = vrcp.pop %v809
        %v812 = vpack.c.bf16 %v803, %v801
        %814 = vrot.lane.b32.xlu0 %v742, 64
        %v815 = vpop.permute.xlu0 %814
        %v818 = vsel %vm791, %v812, 0
        %820 = vmatprep.subr.bf16.mxu0 0
        %821 = vmatpush1.bf16.msra.mxu0 %v815
        %822 = vmatprep.subr.bf16.mxu0 0
        %823 = vmatpush1.bf16.msra.mxu0 0
        %824 = vmatprep.subr.bf16.mxu0 0
        %825 = vmatpush1.bf16.msra.mxu0 0
        %826 = vmatprep.subr.bf16.mxu0 0
        %827 = vmatpush1.bf16.msra.mxu0 0
        %828 = vmatprep.subr.bf16.mxu0 0
        %829 = vmatpush1.bf16.msra.mxu0 0
        %830 = vmatprep.subr.bf16.mxu0 0
        %831 = vmatpush1.bf16.msra.mxu0 0
        %832 = vmatprep.subr.bf16.mxu0 0
        %833 = vmatpush1.bf16.msra.mxu0 0
        %834 = vmatprep.subr.bf16.mxu0 0
        %835 = vmatpush1.bf16.msra.mxu0 0
        %836 = vmatprep.subr.bf16.mxu0 0
        %837 = vmatpush1.bf16.msra.mxu0 0
        %838 = vmatprep.subr.bf16.mxu0 0
        %839 = vmatpush1.bf16.msra.mxu0 0
        %840 = vmatprep.subr.bf16.mxu0 0
        %841 = vmatpush1.bf16.msra.mxu0 0
        %842 = vmatprep.subr.bf16.mxu0 0
        %843 = vmatpush1.bf16.msra.mxu0 0
        %844 = vmatprep.subr.bf16.mxu0 0
        %845 = vmatpush1.bf16.msra.mxu0 0
        %846 = vmatprep.subr.bf16.mxu0 0
        %847 = vmatpush1.bf16.msra.mxu0 0
        %848 = vmatprep.subr.bf16.mxu0 0
        %849 = vmatpush1.bf16.msra.mxu0 0
        %850 = vmatprep.subr.bf16.mxu0 0
        %851 = vmatpush1.bf16.msra.mxu0 0
        %852 = vmatprep.mubr.bf16.mxu0 0
        %853 = vmatmul.mubr.bf16.gmra.mrb[0].mxu0 %v818
        %v854 = vpop.f32.mrb[0].mxu0
        %v855 = vadd.f32 0.0, %v854
        %v856 = vpop.f32.mrb[0].mxu0
        %v857 = vpop.f32.mrb[0].mxu0
        %v858 = vadd.f32 0.0, %v857
        %v859 = vpop.f32.mrb[0].mxu0
        %860 = vdwg.mxu0
        %v861 = vmul.f32 %v855, %v810
        %v862 = vmul.f32 %v858, %v811
        %864 = vrot.lane.b32.xlu0 %v741, 96
        %v865 = vpop.permute.xlu0 %864
        %v867 = vsel %vm743, %v865, 0
        %869 = vmatprep.subr.bf16.mxu0 0
        %870 = vmatpush1.bf16.xpose.msra.mxu0 %v748
        %871 = vmatprep.subr.bf16.mxu0 0
        %872 = vmatpush1.bf16.xpose.msra.mxu0 0
        %873 = vmatprep.subr.bf16.mxu0 0
        %874 = vmatpush1.bf16.xpose.msra.mxu0 0
        %875 = vmatprep.subr.bf16.mxu0 0
        %876 = vmatpush1.bf16.xpose.msra.mxu0 0
        %877 = vmatprep.subr.bf16.mxu0 0
        %878 = vmatpush1.bf16.xpose.msra.mxu0 0
        %879 = vmatprep.subr.bf16.mxu0 0
        %880 = vmatpush1.bf16.xpose.msra.mxu0 0
        %881 = vmatprep.subr.bf16.mxu0 0
        %882 = vmatpush1.bf16.xpose.msra.mxu0 0
        %883 = vmatprep.subr.bf16.mxu0 0
        %884 = vmatpush1.bf16.xpose.msra.mxu0 0
        %885 = vmatprep.subr.bf16.mxu0 0
        %886 = vmatpush1.bf16.xpose.msra.mxu0 0
        %887 = vmatprep.subr.bf16.mxu0 0
        %888 = vmatpush1.bf16.xpose.msra.mxu0 0
        %889 = vmatprep.subr.bf16.mxu0 0
        %890 = vmatpush1.bf16.xpose.msra.mxu0 0
        %891 = vmatprep.subr.bf16.mxu0 0
        %892 = vmatpush1.bf16.xpose.msra.mxu0 0
        %893 = vmatprep.subr.bf16.mxu0 0
        %894 = vmatpush1.bf16.xpose.msra.mxu0 0
        %895 = vmatprep.subr.bf16.mxu0 0
        %896 = vmatpush1.bf16.xpose.msra.mxu0 0
        %897 = vmatprep.subr.bf16.mxu0 0
        %898 = vmatpush1.bf16.xpose.msra.mxu0 0
        %899 = vmatprep.subr.bf16.mxu0 0
        %900 = vmatpush1.bf16.xpose.msra.mxu0 0
        %901 = vmatprep.mubr.bf16.mxu0 0
        %902 = vmatmul.mubr.bf16.gmra.mrb[0].mxu0 %v867
        %v903 = vpop.f32.mrb[0].mxu0
        %v904 = vadd.f32 %v739, %v903
        %v905 = vpop.f32.mrb[0].mxu0
        %v906 = vpop.f32.mrb[0].mxu0
        %v907 = vadd.f32 %v740, %v906
        %v908 = vpop.f32.mrb[0].mxu0
        %909 = vdwg.mxu0
        %v910 = vsel %vm791, %v904, -inf
        %911 = vmax.xlane.f32.xlu0 %v910
        %v912 = vpop.xlane.xlu0 %911
        %v913 = vsel %vm791, %v907, -inf
        %914 = vmax.xlane.f32.xlu0 %v913
        %v915 = vpop.xlane.xlu0 %914
        %v916 = vsub.f32 %v904, %v912
        %v917 = vsub.f32 %v907, %v915
        %v918 = vmul.f32 %v916, 1.442695
        %v919 = vpow.pop %v918
        %v920 = vmul.f32 %v917, 1.442695
        %v921 = vpow.pop %v920
        %v922 = vsel %vm791, %v919, 0.0
        %923 = vadd.xlane.f32.xlu0 %v922
        %v924 = vpop.xlane.xlu0 %923
        %v925 = vsel %vm791, %v921, 0.0
        %926 = vadd.xlane.f32.xlu0 %v925
        %v927 = vpop.xlane.xlu0 %926
        %v928 = vrcp.pop %v924
        %v929 = vrcp.pop %v927
        %v930 = vpack.c.bf16 %v921, %v919
        %v932 = vsel %vm791, %v930, 0
        %934 = vmatprep.subr.bf16.mxu0 0
        %935 = vmatpush1.bf16.msra.mxu0 %v815
        %936 = vmatprep.subr.bf16.mxu0 0
        %937 = vmatpush1.bf16.msra.mxu0 0
        %938 = vmatprep.subr.bf16.mxu0 0
        %939 = vmatpush1.bf16.msra.mxu0 0
        %940 = vmatprep.subr.bf16.mxu0 0
        %941 = vmatpush1.bf16.msra.mxu0 0
        %942 = vmatprep.subr.bf16.mxu0 0
        %943 = vmatpush1.bf16.msra.mxu0 0
        %944 = vmatprep.subr.bf16.mxu0 0
        %945 = vmatpush1.bf16.msra.mxu0 0
        %946 = vmatprep.subr.bf16.mxu0 0
        %947 = vmatpush1.bf16.msra.mxu0 0
        %948 = vmatprep.subr.bf16.mxu0 0
        %949 = vmatpush1.bf16.msra.mxu0 0
        %950 = vmatprep.subr.bf16.mxu0 0
        %951 = vmatpush1.bf16.msra.mxu0 0
        %952 = vmatprep.subr.bf16.mxu0 0
        %953 = vmatpush1.bf16.msra.mxu0 0
        %954 = vmatprep.subr.bf16.mxu0 0
        %955 = vmatpush1.bf16.msra.mxu0 0
        %956 = vmatprep.subr.bf16.mxu0 0
        %957 = vmatpush1.bf16.msra.mxu0 0
        %958 = vmatprep.subr.bf16.mxu0 0
        %959 = vmatpush1.bf16.msra.mxu0 0
        %960 = vmatprep.subr.bf16.mxu0 0
        %961 = vmatpush1.bf16.msra.mxu0 0
        %962 = vmatprep.subr.bf16.mxu0 0
        %963 = vmatpush1.bf16.msra.mxu0 0
        %964 = vmatprep.subr.bf16.mxu0 0
        %965 = vmatpush1.bf16.msra.mxu0 0
        %966 = vmatprep.mubr.bf16.mxu0 0
        %967 = vmatmul.mubr.bf16.gmra.mrb[0].mxu0 %v932
        %v968 = vpop.f32.mrb[0].mxu0
        %v969 = vadd.f32 0.0, %v968
        %v970 = vpop.f32.mrb[0].mxu0
        %v971 = vpop.f32.mrb[0].mxu0
        %v972 = vadd.f32 0.0, %v971
        %v973 = vpop.f32.mrb[0].mxu0
        %974 = vdwg.mxu0
        %v975 = vmul.f32 %v969, %v928
        %v976 = vmul.f32 %v972, %v929
        %977 = vrot.lane.b32.xlu0 %v741, 64
        %v978 = vpop.permute.xlu0 %977
        %979 = vrot.lane.b32.xlu0 %v742, 96
        %v980 = vpop.permute.xlu0 %979
        %v982 = vsel %vm743, %v978, 0
        %v985 = vsel %vm743, %v980, 0
        %987 = vmatprep.subr.bf16.mxu0 0
        %988 = vmatpush1.bf16.xpose.msra.mxu0 %v985
        %989 = vmatprep.subr.bf16.mxu0 0
        %990 = vmatpush1.bf16.xpose.msra.mxu0 0
        %991 = vmatprep.subr.bf16.mxu0 0
        %992 = vmatpush1.bf16.xpose.msra.mxu0 0
        %993 = vmatprep.subr.bf16.mxu0 0
        %994 = vmatpush1.bf16.xpose.msra.mxu0 0
        %995 = vmatprep.subr.bf16.mxu0 0
        %996 = vmatpush1.bf16.xpose.msra.mxu0 0
        %997 = vmatprep.subr.bf16.mxu0 0
        %998 = vmatpush1.bf16.xpose.msra.mxu0 0
        %999 = vmatprep.subr.bf16.mxu0 0
        %1000 = vmatpush1.bf16.xpose.msra.mxu0 0
        %1001 = vmatprep.subr.bf16.mxu0 0
        %1002 = vmatpush1.bf16.xpose.msra.mxu0 0
        %1003 = vmatprep.subr.bf16.mxu0 0
        %1004 = vmatpush1.bf16.xpose.msra.mxu0 0
        %1005 = vmatprep.subr.bf16.mxu0 0
        %1006 = vmatpush1.bf16.xpose.msra.mxu0 0
        %1007 = vmatprep.subr.bf16.mxu0 0
        %1008 = vmatpush1.bf16.xpose.msra.mxu0 0
        %1009 = vmatprep.subr.bf16.mxu0 0
        %1010 = vmatpush1.bf16.xpose.msra.mxu0 0
        %1011 = vmatprep.subr.bf16.mxu0 0
        %1012 = vmatpush1.bf16.xpose.msra.mxu0 0
        %1013 = vmatprep.subr.bf16.mxu0 0
        %1014 = vmatpush1.bf16.xpose.msra.mxu0 0
        %1015 = vmatprep.subr.bf16.mxu0 0
        %1016 = vmatpush1.bf16.xpose.msra.mxu0 0
        %1017 = vmatprep.subr.bf16.mxu0 0
        %1018 = vmatpush1.bf16.xpose.msra.mxu0 0
        %1019 = vmatprep.mubr.bf16.mxu0 0
        %1020 = vmatmul.mubr.bf16.gmra.mrb[0].mxu0 %v982
        %v1021 = vpop.f32.mrb[0].mxu0
        %v1022 = vadd.f32 %v739, %v1021
        %v1023 = vpop.f32.mrb[0].mxu0
        %v1024 = vpop.f32.mrb[0].mxu0
        %v1025 = vadd.f32 %v740, %v1024
        %v1026 = vpop.f32.mrb[0].mxu0
        %1027 = vdwg.mxu0
        %v1028 = vsel %vm791, %v1022, -inf
        %1029 = vmax.xlane.f32.xlu0 %v1028
        %v1030 = vpop.xlane.xlu0 %1029
        %v1031 = vsel %vm791, %v1025, -inf
        %1032 = vmax.xlane.f32.xlu0 %v1031
        %v1033 = vpop.xlane.xlu0 %1032
        %v1034 = vsub.f32 %v1022, %v1030
        %v1035 = vsub.f32 %v1025, %v1033
        %v1036 = vmul.f32 %v1034, 1.442695
        %v1037 = vpow.pop %v1036
        %v1038 = vmul.f32 %v1035, 1.442695
        %v1039 = vpow.pop %v1038
        %v1040 = vsel %vm791, %v1037, 0.0
        %1041 = vadd.xlane.f32.xlu0 %v1040
        %v1042 = vpop.xlane.xlu0 %1041
        %v1043 = vsel %vm791, %v1039, 0.0
        %1044 = vadd.xlane.f32.xlu0 %v1043
        %v1045 = vpop.xlane.xlu0 %1044
        %v1046 = vrcp.pop %v1042
        %v1047 = vrcp.pop %v1045
        %v1048 = vpack.c.bf16 %v1039, %v1037
        %1049 = vrot.lane.b32.xlu0 %v742, 32
        %v1050 = vpop.permute.xlu0 %1049
        %v1053 = vsel %vm791, %v1048, 0
        %1055 = vmatprep.subr.bf16.mxu0 0
        %1056 = vmatpush1.bf16.msra.mxu0 %v1050
        %1057 = vmatprep.subr.bf16.mxu0 0
        %1058 = vmatpush1.bf16.msra.mxu0 0
        %1059 = vmatprep.subr.bf16.mxu0 0
        %1060 = vmatpush1.bf16.msra.mxu0 0
        %1061 = vmatprep.subr.bf16.mxu0 0
        %1062 = vmatpush1.bf16.msra.mxu0 0
        %1063 = vmatprep.subr.bf16.mxu0 0
        %1064 = vmatpush1.bf16.msra.mxu0 0
        %1065 = vmatprep.subr.bf16.mxu0 0
        %1066 = vmatpush1.bf16.msra.mxu0 0
        %1067 = vmatprep.subr.bf16.mxu0 0
        %1068 = vmatpush1.bf16.msra.mxu0 0
        %1069 = vmatprep.subr.bf16.mxu0 0
        %1070 = vmatpush1.bf16.msra.mxu0 0
        %1071 = vmatprep.subr.bf16.mxu0 0
        %1072 = vmatpush1.bf16.msra.mxu0 0
        %1073 = vmatprep.subr.bf16.mxu0 0
        %1074 = vmatpush1.bf16.msra.mxu0 0
        %1075 = vmatprep.subr.bf16.mxu0 0
        %1076 = vmatpush1.bf16.msra.mxu0 0
        %1077 = vmatprep.subr.bf16.mxu0 0
        %1078 = vmatpush1.bf16.msra.mxu0 0
        %1079 = vmatprep.subr.bf16.mxu0 0
        %1080 = vmatpush1.bf16.msra.mxu0 0
        %1081 = vmatprep.subr.bf16.mxu0 0
        %1082 = vmatpush1.bf16.msra.mxu0 0
        %1083 = vmatprep.subr.bf16.mxu0 0
        %1084 = vmatpush1.bf16.msra.mxu0 0
        %1085 = vmatprep.subr.bf16.mxu0 0
        %1086 = vmatpush1.bf16.msra.mxu0 0
        %1087 = vmatprep.mubr.bf16.mxu0 0
        %1088 = vmatmul.mubr.bf16.gmra.mrb[0].mxu0 %v1053
        %v1089 = vpop.f32.mrb[0].mxu0
        %v1090 = vadd.f32 0.0, %v1089
        %v1091 = vpop.f32.mrb[0].mxu0
        %v1092 = vpop.f32.mrb[0].mxu0
        %v1093 = vadd.f32 0.0, %v1092
        %v1094 = vpop.f32.mrb[0].mxu0
        %1095 = vdwg.mxu0
        %v1096 = vmul.f32 %v1090, %v1046
        %v1097 = vmul.f32 %v1093, %v1047
        %1098 = vrot.lane.b32.xlu0 %v741, 32
        %v1099 = vpop.permute.xlu0 %1098
        %v1101 = vsel %vm743, %v1099, 0
        %1103 = vmatprep.subr.bf16.mxu0 0
        %1104 = vmatpush1.bf16.xpose.msra.mxu0 %v985
        %1105 = vmatprep.subr.bf16.mxu0 0
        %1106 = vmatpush1.bf16.xpose.msra.mxu0 0
        %1107 = vmatprep.subr.bf16.mxu0 0
        %1108 = vmatpush1.bf16.xpose.msra.mxu0 0
        %1109 = vmatprep.subr.bf16.mxu0 0
        %1110 = vmatpush1.bf16.xpose.msra.mxu0 0
        %1111 = vmatprep.subr.bf16.mxu0 0
        %1112 = vmatpush1.bf16.xpose.msra.mxu0 0
        %1113 = vmatprep.subr.bf16.mxu0 0
        %1114 = vmatpush1.bf16.xpose.msra.mxu0 0
        %1115 = vmatprep.subr.bf16.mxu0 0
        %1116 = vmatpush1.bf16.xpose.msra.mxu0 0
        %1117 = vmatprep.subr.bf16.mxu0 0
        %1118 = vmatpush1.bf16.xpose.msra.mxu0 0
        %1119 = vmatprep.subr.bf16.mxu0 0
        %1120 = vmatpush1.bf16.xpose.msra.mxu0 0
        %1121 = vmatprep.subr.bf16.mxu0 0
        %1122 = vmatpush1.bf16.xpose.msra.mxu0 0
        %1123 = vmatprep.subr.bf16.mxu0 0
        %1124 = vmatpush1.bf16.xpose.msra.mxu0 0
        %1125 = vmatprep.subr.bf16.mxu0 0
        %1126 = vmatpush1.bf16.xpose.msra.mxu0 0
        %1127 = vmatprep.subr.bf16.mxu0 0
        %1128 = vmatpush1.bf16.xpose.msra.mxu0 0
        %1129 = vmatprep.subr.bf16.mxu0 0
        %1130 = vmatpush1.bf16.xpose.msra.mxu0 0
        %1131 = vmatprep.subr.bf16.mxu0 0
        %1132 = vmatpush1.bf16.xpose.msra.mxu0 0
        %1133 = vmatprep.subr.bf16.mxu0 0
        %1134 = vmatpush1.bf16.xpose.msra.mxu0 0
        %1135 = vmatprep.mubr.bf16.mxu0 0
        %1136 = vmatmul.mubr.bf16.gmra.mrb[0].mxu0 %v1101
        %v1137 = vpop.f32.mrb[0].mxu0
        %v1138 = vadd.f32 %v739, %v1137
        %v1139 = vpop.f32.mrb[0].mxu0
        %v1140 = vpop.f32.mrb[0].mxu0
        %v1141 = vadd.f32 %v740, %v1140
        %v1142 = vpop.f32.mrb[0].mxu0
        %1143 = vdwg.mxu0
        %v1144 = vsel %vm791, %v1138, -inf
        %1145 = vmax.xlane.f32.xlu0 %v1144
        %v1146 = vpop.xlane.xlu0 %1145
        %v1147 = vsel %vm791, %v1141, -inf
        %1148 = vmax.xlane.f32.xlu0 %v1147
        %v1149 = vpop.xlane.xlu0 %1148
        %v1150 = vsub.f32 %v1138, %v1146
        %v1151 = vsub.f32 %v1141, %v1149
        %v1152 = vmul.f32 %v1150, 1.442695
        %v1153 = vpow.pop %v1152
        %v1154 = vmul.f32 %v1151, 1.442695
        %v1155 = vpow.pop %v1154
        %v1156 = vsel %vm791, %v1153, 0.0
        %1157 = vadd.xlane.f32.xlu0 %v1156
        %v1158 = vpop.xlane.xlu0 %1157
        %v1159 = vsel %vm791, %v1155, 0.0
        %1160 = vadd.xlane.f32.xlu0 %v1159
        %v1161 = vpop.xlane.xlu0 %1160
        %v1162 = vrcp.pop %v1158
        %v1163 = vrcp.pop %v1161
        %v1164 = vpack.c.bf16 %v1155, %v1153
        %v1166 = vsel %vm791, %v1164, 0
        %1168 = vmatprep.subr.bf16.mxu0 0
        %1169 = vmatpush1.bf16.msra.mxu0 %v1050
        %1170 = vmatprep.subr.bf16.mxu0 0
        %1171 = vmatpush1.bf16.msra.mxu0 0
        %1172 = vmatprep.subr.bf16.mxu0 0
        %1173 = vmatpush1.bf16.msra.mxu0 0
        %1174 = vmatprep.subr.bf16.mxu0 0
        %1175 = vmatpush1.bf16.msra.mxu0 0
        %1176 = vmatprep.subr.bf16.mxu0 0
        %1177 = vmatpush1.bf16.msra.mxu0 0
        %1178 = vmatprep.subr.bf16.mxu0 0
        %1179 = vmatpush1.bf16.msra.mxu0 0
        %1180 = vmatprep.subr.bf16.mxu0 0
        %1181 = vmatpush1.bf16.msra.mxu0 0
        %1182 = vmatprep.subr.bf16.mxu0 0
        %1183 = vmatpush1.bf16.msra.mxu0 0
        %1184 = vmatprep.subr.bf16.mxu0 0
        %1185 = vmatpush1.bf16.msra.mxu0 0
        %1186 = vmatprep.subr.bf16.mxu0 0
        %1187 = vmatpush1.bf16.msra.mxu0 0
        %1188 = vmatprep.subr.bf16.mxu0 0
        %1189 = vmatpush1.bf16.msra.mxu0 0
        %1190 = vmatprep.subr.bf16.mxu0 0
        %1191 = vmatpush1.bf16.msra.mxu0 0
        %1192 = vmatprep.subr.bf16.mxu0 0
        %1193 = vmatpush1.bf16.msra.mxu0 0
        %1194 = vmatprep.subr.bf16.mxu0 0
        %1195 = vmatpush1.bf16.msra.mxu0 0
        %1196 = vmatprep.subr.bf16.mxu0 0
        %1197 = vmatpush1.bf16.msra.mxu0 0
        %1198 = vmatprep.subr.bf16.mxu0 0
        %1199 = vmatpush1.bf16.msra.mxu0 0
        %1200 = vmatprep.mubr.bf16.mxu0 0
        %1201 = vmatmul.mubr.bf16.gmra.mrb[0].mxu0 %v1166
        %v1202 = vpop.f32.mrb[0].mxu0
        %v1203 = vadd.f32 0.0, %v1202
        %v1204 = vpop.f32.mrb[0].mxu0
        %v1205 = vpop.f32.mrb[0].mxu0
        %v1206 = vadd.f32 0.0, %v1205
        %v1207 = vpop.f32.mrb[0].mxu0
        %1208 = vdwg.mxu0
        %v1209 = vmul.f32 %v1203, %v1162
        %v1210 = vmul.f32 %v1206, %v1163
        %1213 = vrot.lane.b32.xlu0 %v975, 32
        %v1214 = vpop.permute.xlu0 %1213
        %1215 = vrot.lane.b32.xlu0 %v976, 32
        %v1216 = vpop.permute.xlu0 %1215
        %1221 = vrot.lane.b32.xlu0 %v1096, 64
        %v1222 = vpop.permute.xlu0 %1221
        %1223 = vrot.lane.b32.xlu0 %v1097, 64
        %v1224 = vpop.permute.xlu0 %1223
        %1229 = vrot.lane.b32.xlu0 %v1209, 96
        %v1230 = vpop.permute.xlu0 %1229
        %1231 = vrot.lane.b32.xlu0 %v1210, 96
        %v1232 = vpop.permute.xlu0 %1231
        %v1235 = vsel %vm743, %v861, %v1214
        %v1236 = vsel %vm743, %v862, %v1216
        %vm1237 = vcmask 523264
        %v1238 = vsel %vm1237, %v1235, %v1222
        %v1239 = vsel %vm1237, %v1236, %v1224
        %vm1240 = vcmask 785408
        %v1241 = vsel %vm1240, %v1238, %v1230
        %v1242 = vsel %vm1240, %v1239, %v1232
        %v1243 = vld [vmem:[%s450] sm:$0xf]
        %v1244 = vld [vmem:[%s450 + $0x4] sm:$0xf]
        %v1245 = vld [vmem:[%s450 + $0x8] sm:$0xf]
        %v1246 = vld [vmem:[%s450 + $0xc] sm:$0xf]
        %v1247 = vld [vmem:[%s450 + $0x10] sm:$0xf]
        %v1248 = vld [vmem:[%s450 + $0x14] sm:$0xf]
        %v1249 = vld [vmem:[%s450 + $0x18] sm:$0xf]
        %v1250 = vld [vmem:[%s450 + $0x1c] sm:$0xf]
        %v1251 = vld [vmem:[%s450 + $0x20] sm:$0xf]
        %v1252 = vld [vmem:[%s450 + $0x24] sm:$0xf]
        %v1253 = vld [vmem:[%s450 + $0x28] sm:$0xf]
        %v1254 = vld [vmem:[%s450 + $0x2c] sm:$0xf]
        %v1255 = vld [vmem:[%s450 + $0x30] sm:$0xf]
        %v1256 = vld [vmem:[%s450 + $0x34] sm:$0xf]
        %v1257 = vld [vmem:[%s450 + $0x38] sm:$0xf]
        %v1258 = vld [vmem:[%s450 + $0x3c] sm:$0xf]
        %v1259 = vpack.c.bf16 %v1242, %v1241
        %v1276 = vunpack.c.l.b16 %v1243
        %v1277 = vunpack.c.l.b16 %v1244
        %v1278 = vunpack.c.l.b16 %v1245
        %v1279 = vunpack.c.l.b16 %v1246
        %v1280 = vunpack.c.l.b16 %v1247
        %v1281 = vunpack.c.l.b16 %v1248
        %v1282 = vunpack.c.l.b16 %v1249
        %v1283 = vunpack.c.l.b16 %v1250
        %v1284 = vunpack.c.l.b16 %v1251
        %v1285 = vunpack.c.l.b16 %v1252
        %v1286 = vunpack.c.l.b16 %v1253
        %v1287 = vunpack.c.l.b16 %v1254
        %v1288 = vunpack.c.l.b16 %v1255
        %v1289 = vunpack.c.l.b16 %v1256
        %v1290 = vunpack.c.l.b16 %v1257
        %v1291 = vunpack.c.l.b16 %v1258
        %v1292 = vpack.c.b16 %v1277, %v1276
        %v1293 = vpack.c.b16 %v1279, %v1278
        %v1294 = vpack.c.b16 %v1281, %v1280
        %v1295 = vpack.c.b16 %v1283, %v1282
        %v1296 = vpack.c.b16 %v1285, %v1284
        %v1297 = vpack.c.b16 %v1287, %v1286
        %v1298 = vpack.c.b16 %v1289, %v1288
        %v1299 = vpack.c.b16 %v1291, %v1290
        %1308 = vmatprep.subr.bf16.mxu0 0
        %1309 = vmatpush1.bf16.xpose.msra.mxu0 %v1292
        %1310 = vmatprep.subr.bf16.mxu0 0
        %1311 = vmatpush1.bf16.xpose.msra.mxu0 %v1293
        %1312 = vmatprep.subr.bf16.mxu0 0
        %1313 = vmatpush1.bf16.xpose.msra.mxu0 %v1294
        %1314 = vmatprep.subr.bf16.mxu0 0
        %1315 = vmatpush1.bf16.xpose.msra.mxu0 %v1295
        %1316 = vmatprep.subr.bf16.mxu0 0
        %1317 = vmatpush1.bf16.xpose.msra.mxu0 %v1296
        %1318 = vmatprep.subr.bf16.mxu0 0
        %1319 = vmatpush1.bf16.xpose.msra.mxu0 %v1297
        %1320 = vmatprep.subr.bf16.mxu0 0
        %1321 = vmatpush1.bf16.xpose.msra.mxu0 %v1298
        %1322 = vmatprep.subr.bf16.mxu0 0
        %1323 = vmatpush1.bf16.xpose.msra.mxu0 %v1299
        %1324 = vmatprep.subr.bf16.mxu0 0
        %1325 = vmatpush1.bf16.xpose.msra.mxu0 0
        %1326 = vmatprep.subr.bf16.mxu0 0
        %1327 = vmatpush1.bf16.xpose.msra.mxu0 0
        %1328 = vmatprep.subr.bf16.mxu0 0
        %1329 = vmatpush1.bf16.xpose.msra.mxu0 0
        %1330 = vmatprep.subr.bf16.mxu0 0
        %1331 = vmatpush1.bf16.xpose.msra.mxu0 0
        %1332 = vmatprep.subr.bf16.mxu0 0
        %1333 = vmatpush1.bf16.xpose.msra.mxu0 0
        %1334 = vmatprep.subr.bf16.mxu0 0
        %1335 = vmatpush1.bf16.xpose.msra.mxu0 0
        %1336 = vmatprep.subr.bf16.mxu0 0
        %1337 = vmatpush1.bf16.xpose.msra.mxu0 0
        %1338 = vmatprep.subr.bf16.mxu0 0
        %1339 = vmatpush1.bf16.xpose.msra.mxu0 0
        %1340 = vmatprep.mubr.bf16.mxu0 0
        %1341 = vmatmul.mubr.bf16.gmra.mrb[0].mxu0 %v1259
        %v1342 = vpop.f32.mrb[0].mxu0
        %v1343 = vadd.f32 %v476, %v1342
        %v1344 = vpop.f32.mrb[0].mxu0
        %v1345 = vpop.f32.mrb[0].mxu0
        %v1346 = vadd.f32 %v477, %v1345
        %v1347 = vpop.f32.mrb[0].mxu0
        %1348 = vdwg.mxu0
        %1349 = vst [vmem:[#allocation3] sm:$0xff] %v1343
        %1350 = vst [vmem:[#allocation3 + $0x8] sm:$0xff] %v1346
        %v1351 = vld [vmem:[%s440] sm:$0x1]
        %v1352 = vmul.f32 %v1343, %v1343
        %v1353 = vmul.f32 %v1346, %v1346
        %1354 = vadd.xlane.f32.xlu0 %v1352
        %v1355 = vpop.xlane.xlu0 %1354
        %1356 = vadd.xlane.f32.xlu0 %v1353
        %v1357 = vpop.xlane.xlu0 %1356
        %v1358 = vmul.f32 %v1355, %v485
        %v1359 = vmul.f32 %v1357, %v485
        %v1360 = vadd.f32 %v1358, 1e-06
        %v1361 = vadd.f32 %v1359, 1e-06
        %v1362 = vrsqrt.pop %v1360
        %v1363 = vrsqrt.pop %v1361
        %v1364 = vmul.f32 %v1343, %v1362
        %v1365 = vmul.f32 %v1346, %v1363
        %v1367 = vlaneseq
        %v1368 = vshrl.u32 %v1367, 7
        %v1369 = vsub.s32 0, %v1368
        %v1370 = vrot.slane %v1351, %v1369
        %v1372 = vmul.f32 %v1364, %v1370
        %v1373 = vmul.f32 %v1365, %v1370
        %v1374 = vld [vmem:[%s455] sm:$0xf]
        %v1375 = vld [vmem:[%s455 + $0x4] sm:$0xf]
        %v1376 = vld [vmem:[%s455 + $0x8] sm:$0xf]
        %v1377 = vld [vmem:[%s455 + $0xc] sm:$0xf]
        %v1378 = vld [vmem:[%s455 + $0x10] sm:$0xf]
        %v1379 = vld [vmem:[%s455 + $0x14] sm:$0xf]
        %v1380 = vld [vmem:[%s455 + $0x18] sm:$0xf]
        %v1381 = vld [vmem:[%s455 + $0x1c] sm:$0xf]
        %v1382 = vld [vmem:[%s455 + $0x20] sm:$0xf]
        %v1383 = vld [vmem:[%s455 + $0x24] sm:$0xf]
        %v1384 = vld [vmem:[%s455 + $0x28] sm:$0xf]
        %v1385 = vld [vmem:[%s455 + $0x2c] sm:$0xf]
        %v1386 = vld [vmem:[%s455 + $0x30] sm:$0xf]
        %v1387 = vld [vmem:[%s455 + $0x34] sm:$0xf]
        %v1388 = vld [vmem:[%s455 + $0x38] sm:$0xf]
        %v1389 = vld [vmem:[%s455 + $0x3c] sm:$0xf]
        %v1390 = vld [vmem:[%s455 + $0x40] sm:$0xf]
        %v1391 = vld [vmem:[%s455 + $0x44] sm:$0xf]
        %v1392 = vld [vmem:[%s455 + $0x48] sm:$0xf]
        %v1393 = vld [vmem:[%s455 + $0x4c] sm:$0xf]
        %v1394 = vld [vmem:[%s455 + $0x50] sm:$0xf]
        %v1395 = vld [vmem:[%s455 + $0x54] sm:$0xf]
        %v1396 = vld [vmem:[%s455 + $0x58] sm:$0xf]
        %v1397 = vld [vmem:[%s455 + $0x5c] sm:$0xf]
        %v1398 = vld [vmem:[%s455 + $0x60] sm:$0xf]
        %v1399 = vld [vmem:[%s455 + $0x64] sm:$0xf]
        %v1400 = vld [vmem:[%s455 + $0x68] sm:$0xf]
        %v1401 = vld [vmem:[%s455 + $0x6c] sm:$0xf]
        %v1402 = vld [vmem:[%s455 + $0x70] sm:$0xf]
        %v1403 = vld [vmem:[%s455 + $0x74] sm:$0xf]
        %v1404 = vld [vmem:[%s455 + $0x78] sm:$0xf]
        %v1405 = vld [vmem:[%s455 + $0x7c] sm:$0xf]
        %v1406 = vld [vmem:[%s455 + $0x80] sm:$0xf]
        %v1407 = vld [vmem:[%s455 + $0x84] sm:$0xf]
        %v1408 = vld [vmem:[%s455 + $0x88] sm:$0xf]
        %v1409 = vld [vmem:[%s455 + $0x8c] sm:$0xf]
        %v1410 = vld [vmem:[%s455 + $0x90] sm:$0xf]
        %v1411 = vld [vmem:[%s455 + $0x94] sm:$0xf]
        %v1412 = vld [vmem:[%s455 + $0x98] sm:$0xf]
        %v1413 = vld [vmem:[%s455 + $0x9c] sm:$0xf]
        %v1414 = vld [vmem:[%s455 + $0xa0] sm:$0xf]
        %v1415 = vld [vmem:[%s455 + $0xa4] sm:$0xf]
        %v1416 = vld [vmem:[%s455 + $0xa8] sm:$0xf]
        %v1417 = vld [vmem:[%s455 + $0xac] sm:$0xf]
        %v1418 = vld [vmem:[%s455 + $0xb0] sm:$0xf]
        %v1419 = vld [vmem:[%s455 + $0xb4] sm:$0xf]
        %v1420 = vld [vmem:[%s455 + $0xb8] sm:$0xf]
        %v1421 = vld [vmem:[%s455 + $0xbc] sm:$0xf]
        %v1422 = vld [vmem:[%s455 + $0xc0] sm:$0xf]
        %v1423 = vld [vmem:[%s455 + $0xc4] sm:$0xf]
        %v1424 = vld [vmem:[%s455 + $0xc8] sm:$0xf]
        %v1425 = vld [vmem:[%s455 + $0xcc] sm:$0xf]
        %v1426 = vld [vmem:[%s455 + $0xd0] sm:$0xf]
        %v1427 = vld [vmem:[%s455 + $0xd4] sm:$0xf]
        %v1428 = vld [vmem:[%s455 + $0xd8] sm:$0xf]
        %v1429 = vld [vmem:[%s455 + $0xdc] sm:$0xf]
        %v1430 = vld [vmem:[%s455 + $0xe0] sm:$0xf]
        %v1431 = vld [vmem:[%s455 + $0xe4] sm:$0xf]
        %v1432 = vld [vmem:[%s455 + $0xe8] sm:$0xf]
        %v1433 = vld [vmem:[%s455 + $0xec] sm:$0xf]
        %v1434 = vld [vmem:[%s455 + $0xf0] sm:$0xf]
        %v1435 = vld [vmem:[%s455 + $0xf4] sm:$0xf]
        %v1436 = vld [vmem:[%s455 + $0xf8] sm:$0xf]
        %v1437 = vld [vmem:[%s455 + $0xfc] sm:$0xf]
        %v1438 = vpack.c.bf16 %v1373, %v1372
        %v1503 = vunpack.c.l.b16 %v1374
        %v1504 = vunpack.c.l.b16 %v1375
        %v1505 = vunpack.c.l.b16 %v1376
        %v1506 = vunpack.c.l.b16 %v1377
        %v1507 = vunpack.c.l.b16 %v1378
        %v1508 = vunpack.c.l.b16 %v1379
        %v1509 = vunpack.c.l.b16 %v1380
        %v1510 = vunpack.c.l.b16 %v1381
        %v1511 = vunpack.c.l.b16 %v1382
        %v1512 = vunpack.c.l.b16 %v1383
        %v1513 = vunpack.c.l.b16 %v1384
        %v1514 = vunpack.c.l.b16 %v1385
        %v1515 = vunpack.c.l.b16 %v1386
        %v1516 = vunpack.c.l.b16 %v1387
        %v1517 = vunpack.c.l.b16 %v1388
        %v1518 = vunpack.c.l.b16 %v1389
        %v1519 = vunpack.c.l.b16 %v1390
        %v1520 = vunpack.c.l.b16 %v1391
        %v1521 = vunpack.c.l.b16 %v1392
        %v1522 = vunpack.c.l.b16 %v1393
        %v1523 = vunpack.c.l.b16 %v1394
        %v1524 = vunpack.c.l.b16 %v1395
        %v1525 = vunpack.c.l.b16 %v1396
        %v1526 = vunpack.c.l.b16 %v1397
        %v1527 = vunpack.c.l.b16 %v1398
        %v1528 = vunpack.c.l.b16 %v1399
        %v1529 = vunpack.c.l.b16 %v1400
        %v1530 = vunpack.c.l.b16 %v1401
        %v1531 = vunpack.c.l.b16 %v1402
        %v1532 = vunpack.c.l.b16 %v1403
        %v1533 = vunpack.c.l.b16 %v1404
        %v1534 = vunpack.c.l.b16 %v1405
        %v1535 = vunpack.c.l.b16 %v1406
        %v1536 = vunpack.c.l.b16 %v1407
        %v1537 = vunpack.c.l.b16 %v1408
        %v1538 = vunpack.c.l.b16 %v1409
        %v1539 = vunpack.c.l.b16 %v1410
        %v1540 = vunpack.c.l.b16 %v1411
        %v1541 = vunpack.c.l.b16 %v1412
        %v1542 = vunpack.c.l.b16 %v1413
        %v1543 = vunpack.c.l.b16 %v1414
        %v1544 = vunpack.c.l.b16 %v1415
        %v1545 = vunpack.c.l.b16 %v1416
        %v1546 = vunpack.c.l.b16 %v1417
        %v1547 = vunpack.c.l.b16 %v1418
        %v1548 = vunpack.c.l.b16 %v1419
        %v1549 = vunpack.c.l.b16 %v1420
        %v1550 = vunpack.c.l.b16 %v1421
        %v1551 = vunpack.c.l.b16 %v1422
        %v1552 = vunpack.c.l.b16 %v1423
        %v1553 = vunpack.c.l.b16 %v1424
        %v1554 = vunpack.c.l.b16 %v1425
        %v1555 = vunpack.c.l.b16 %v1426
        %v1556 = vunpack.c.l.b16 %v1427
        %v1557 = vunpack.c.l.b16 %v1428
        %v1558 = vunpack.c.l.b16 %v1429
        %v1559 = vunpack.c.l.b16 %v1430
        %v1560 = vunpack.c.l.b16 %v1431
        %v1561 = vunpack.c.l.b16 %v1432
        %v1562 = vunpack.c.l.b16 %v1433
        %v1563 = vunpack.c.l.b16 %v1434
        %v1564 = vunpack.c.l.b16 %v1435
        %v1565 = vunpack.c.l.b16 %v1436
        %v1566 = vunpack.c.l.b16 %v1437
        %v1567 = vpack.c.b16 %v1504, %v1503
        %v1568 = vpack.c.b16 %v1506, %v1505
        %v1569 = vpack.c.b16 %v1508, %v1507
        %v1570 = vpack.c.b16 %v1510, %v1509
        %v1571 = vpack.c.b16 %v1512, %v1511
        %v1572 = vpack.c.b16 %v1514, %v1513
        %v1573 = vpack.c.b16 %v1516, %v1515
        %v1574 = vpack.c.b16 %v1518, %v1517
        %v1575 = vpack.c.b16 %v1520, %v1519
        %v1576 = vpack.c.b16 %v1522, %v1521
        %v1577 = vpack.c.b16 %v1524, %v1523
        %v1578 = vpack.c.b16 %v1526, %v1525
        %v1579 = vpack.c.b16 %v1528, %v1527
        %v1580 = vpack.c.b16 %v1530, %v1529
        %v1581 = vpack.c.b16 %v1532, %v1531
        %v1582 = vpack.c.b16 %v1534, %v1533
        %v1583 = vpack.c.b16 %v1536, %v1535
        %v1584 = vpack.c.b16 %v1538, %v1537
        %v1585 = vpack.c.b16 %v1540, %v1539
        %v1586 = vpack.c.b16 %v1542, %v1541
        %v1587 = vpack.c.b16 %v1544, %v1543
        %v1588 = vpack.c.b16 %v1546, %v1545
        %v1589 = vpack.c.b16 %v1548, %v1547
        %v1590 = vpack.c.b16 %v1550, %v1549
        %v1591 = vpack.c.b16 %v1552, %v1551
        %v1592 = vpack.c.b16 %v1554, %v1553
        %v1593 = vpack.c.b16 %v1556, %v1555
        %v1594 = vpack.c.b16 %v1558, %v1557
        %v1595 = vpack.c.b16 %v1560, %v1559
        %v1596 = vpack.c.b16 %v1562, %v1561
        %v1597 = vpack.c.b16 %v1564, %v1563
        %v1598 = vpack.c.b16 %v1566, %v1565
        %1631 = vmatprep.subr.bf16.mxu0 0
        %1632 = vmatpush1.bf16.xpose.msra.mxu0 %v1567
        %1633 = vmatprep.subr.bf16.mxu0 0
        %1634 = vmatpush1.bf16.xpose.msra.mxu0 %v1568
        %1635 = vmatprep.subr.bf16.mxu0 0
        %1636 = vmatpush1.bf16.xpose.msra.mxu0 %v1569
        %1637 = vmatprep.subr.bf16.mxu0 0
        %1638 = vmatpush1.bf16.xpose.msra.mxu0 %v1570
        %1639 = vmatprep.subr.bf16.mxu0 0
        %1640 = vmatpush1.bf16.xpose.msra.mxu0 %v1571
        %1641 = vmatprep.subr.bf16.mxu0 0
        %1642 = vmatpush1.bf16.xpose.msra.mxu0 %v1572
        %1643 = vmatprep.subr.bf16.mxu0 0
        %1644 = vmatpush1.bf16.xpose.msra.mxu0 %v1573
        %1645 = vmatprep.subr.bf16.mxu0 0
        %1646 = vmatpush1.bf16.xpose.msra.mxu0 %v1574
        %1647 = vmatprep.subr.bf16.mxu0 0
        %1648 = vmatpush1.bf16.xpose.msra.mxu0 %v1575
        %1649 = vmatprep.subr.bf16.mxu0 0
        %1650 = vmatpush1.bf16.xpose.msra.mxu0 %v1576
        %1651 = vmatprep.subr.bf16.mxu0 0
        %1652 = vmatpush1.bf16.xpose.msra.mxu0 %v1577
        %1653 = vmatprep.subr.bf16.mxu0 0
        %1654 = vmatpush1.bf16.xpose.msra.mxu0 %v1578
        %1655 = vmatprep.subr.bf16.mxu0 0
        %1656 = vmatpush1.bf16.xpose.msra.mxu0 %v1579
        %1657 = vmatprep.subr.bf16.mxu0 0
        %1658 = vmatpush1.bf16.xpose.msra.mxu0 %v1580
        %1659 = vmatprep.subr.bf16.mxu0 0
        %1660 = vmatpush1.bf16.xpose.msra.mxu0 %v1581
        %1661 = vmatprep.subr.bf16.mxu0 0
        %1662 = vmatpush1.bf16.xpose.msra.mxu0 %v1582
        %1663 = vmatprep.mubr.bf16.mxu0 0
        %1664 = vmatmul.mubr.bf16.gmra.mrb[0].mxu0 %v1438
        %v1665 = vpop.f32.mrb[0].mxu0
        %v1666 = vadd.f32 0.0, %v1665
        %v1667 = vpop.f32.mrb[0].mxu0
        %v1668 = vadd.f32 0.0, %v1667
        %v1669 = vpop.f32.mrb[0].mxu0
        %v1670 = vadd.f32 0.0, %v1669
        %v1671 = vpop.f32.mrb[0].mxu0
        %v1672 = vadd.f32 0.0, %v1671
        %1673 = vdwg.mxu0
        %1674 = vmatprep.subr.bf16.mxu0 0
        %1675 = vmatpush1.bf16.xpose.msra.mxu0 %v1583
        %1676 = vmatprep.subr.bf16.mxu0 0
        %1677 = vmatpush1.bf16.xpose.msra.mxu0 %v1584
        %1678 = vmatprep.subr.bf16.mxu0 0
        %1679 = vmatpush1.bf16.xpose.msra.mxu0 %v1585
        %1680 = vmatprep.subr.bf16.mxu0 0
        %1681 = vmatpush1.bf16.xpose.msra.mxu0 %v1586
        %1682 = vmatprep.subr.bf16.mxu0 0
        %1683 = vmatpush1.bf16.xpose.msra.mxu0 %v1587
        %1684 = vmatprep.subr.bf16.mxu0 0
        %1685 = vmatpush1.bf16.xpose.msra.mxu0 %v1588
        %1686 = vmatprep.subr.bf16.mxu0 0
        %1687 = vmatpush1.bf16.xpose.msra.mxu0 %v1589
        %1688 = vmatprep.subr.bf16.mxu0 0
        %1689 = vmatpush1.bf16.xpose.msra.mxu0 %v1590
        %1690 = vmatprep.subr.bf16.mxu0 0
        %1691 = vmatpush1.bf16.xpose.msra.mxu0 %v1591
        %1692 = vmatprep.subr.bf16.mxu0 0
        %1693 = vmatpush1.bf16.xpose.msra.mxu0 %v1592
        %1694 = vmatprep.subr.bf16.mxu0 0
        %1695 = vmatpush1.bf16.xpose.msra.mxu0 %v1593
        %1696 = vmatprep.subr.bf16.mxu0 0
        %1697 = vmatpush1.bf16.xpose.msra.mxu0 %v1594
        %1698 = vmatprep.subr.bf16.mxu0 0
        %1699 = vmatpush1.bf16.xpose.msra.mxu0 %v1595
        %1700 = vmatprep.subr.bf16.mxu0 0
        %1701 = vmatpush1.bf16.xpose.msra.mxu0 %v1596
        %1702 = vmatprep.subr.bf16.mxu0 0
        %1703 = vmatpush1.bf16.xpose.msra.mxu0 %v1597
        %1704 = vmatprep.subr.bf16.mxu0 0
        %1705 = vmatpush1.bf16.xpose.msra.mxu0 %v1598
        %1706 = vmatprep.mubr.bf16.mxu0 0
        %1707 = vmatmul.mubr.bf16.gmra.mrb[0].mxu0 %v1438
        %v1708 = vpop.f32.mrb[0].mxu0
        %v1709 = vadd.f32 0.0, %v1708
        %v1710 = vpop.f32.mrb[0].mxu0
        %v1711 = vadd.f32 0.0, %v1710
        %v1712 = vpop.f32.mrb[0].mxu0
        %v1713 = vadd.f32 0.0, %v1712
        %v1714 = vpop.f32.mrb[0].mxu0
        %v1715 = vadd.f32 0.0, %v1714
        %1716 = vdwg.mxu0
        %v1717 = vxor.u32 %v1666, 2147483648
        %v1718 = vxor.u32 %v1668, 2147483648
        %v1719 = vxor.u32 %v1670, 2147483648
        %v1720 = vxor.u32 %v1672, 2147483648
        %v1721 = vmul.f32 %v1717, 1.442695
        %v1722 = vpow.pop %v1721
        %v1723 = vmul.f32 %v1718, 1.442695
        %v1724 = vpow.pop %v1723
        %v1725 = vmul.f32 %v1719, 1.442695
        %v1726 = vpow.pop %v1725
        %v1727 = vmul.f32 %v1720, 1.442695
        %v1728 = vpow.pop %v1727
        %v1729 = vadd.f32 %v1722, 1.0
        %v1730 = vadd.f32 %v1724, 1.0
        %v1731 = vadd.f32 %v1726, 1.0
        %v1732 = vadd.f32 %v1728, 1.0
        %v1733 = vrcp.pop %v1729
        %v1734 = vmul.f32 1.0, %v1733
        %v1735 = vrcp.pop %v1730
        %v1736 = vmul.f32 1.0, %v1735
        %v1737 = vrcp.pop %v1731
        %v1738 = vmul.f32 1.0, %v1737
        %v1739 = vrcp.pop %v1732
        %v1740 = vmul.f32 1.0, %v1739
        %v1741 = vmul.f32 %v1666, %v1734
        %v1742 = vmul.f32 %v1668, %v1736
        %v1743 = vmul.f32 %v1670, %v1738
        %v1744 = vmul.f32 %v1672, %v1740
        %v1745 = vmul.f32 %v1741, %v1709
        %v1746 = vmul.f32 %v1742, %v1711
        %v1747 = vmul.f32 %v1743, %v1713
        %v1748 = vmul.f32 %v1744, %v1715
        %v1749 = vld [vmem:[%s460] sm:$0xff]
        %v1750 = vld [vmem:[%s460 + $0x8] sm:$0xff]
        %v1751 = vld [vmem:[%s460 + $0x10] sm:$0xff]
        %v1752 = vld [vmem:[%s460 + $0x18] sm:$0xff]
        %v1753 = vld [vmem:[%s460 + $0x20] sm:$0xff]
        %v1754 = vld [vmem:[%s460 + $0x28] sm:$0xff]
        %v1755 = vld [vmem:[%s460 + $0x30] sm:$0xff]
        %v1756 = vld [vmem:[%s460 + $0x38] sm:$0xff]
        %v1757 = vld [vmem:[%s460 + $0x40] sm:$0xff]
        %v1758 = vld [vmem:[%s460 + $0x48] sm:$0xff]
        %v1759 = vld [vmem:[%s460 + $0x50] sm:$0xff]
        %v1760 = vld [vmem:[%s460 + $0x58] sm:$0xff]
        %v1761 = vld [vmem:[%s460 + $0x60] sm:$0xff]
        %v1762 = vld [vmem:[%s460 + $0x68] sm:$0xff]
        %v1763 = vld [vmem:[%s460 + $0x70] sm:$0xff]
        %v1764 = vld [vmem:[%s460 + $0x78] sm:$0xff]
        %v1765 = vpack.c.bf16 %v1747, %v1745
        %v1766 = vpack.c.bf16 %v1748, %v1746
        %v1783 = vunpack.c.l.b16 %v1749
        %v1784 = vunpack.c.h.b16 %v1749
        %v1785 = vunpack.c.l.b16 %v1750
        %v1786 = vunpack.c.h.b16 %v1750
        %v1787 = vunpack.c.l.b16 %v1751
        %v1788 = vunpack.c.h.b16 %v1751
        %v1789 = vunpack.c.l.b16 %v1752
        %v1790 = vunpack.c.h.b16 %v1752
        %v1791 = vunpack.c.l.b16 %v1753
        %v1792 = vunpack.c.h.b16 %v1753
        %v1793 = vunpack.c.l.b16 %v1754
        %v1794 = vunpack.c.h.b16 %v1754
        %v1795 = vunpack.c.l.b16 %v1755
        %v1796 = vunpack.c.h.b16 %v1755
        %v1797 = vunpack.c.l.b16 %v1756
        %v1798 = vunpack.c.h.b16 %v1756
        %v1799 = vunpack.c.l.b16 %v1757
        %v1800 = vunpack.c.h.b16 %v1757
        %v1801 = vunpack.c.l.b16 %v1758
        %v1802 = vunpack.c.h.b16 %v1758
        %v1803 = vunpack.c.l.b16 %v1759
        %v1804 = vunpack.c.h.b16 %v1759
        %v1805 = vunpack.c.l.b16 %v1760
        %v1806 = vunpack.c.h.b16 %v1760
        %v1807 = vunpack.c.l.b16 %v1761
        %v1808 = vunpack.c.h.b16 %v1761
        %v1809 = vunpack.c.l.b16 %v1762
        %v1810 = vunpack.c.h.b16 %v1762
        %v1811 = vunpack.c.l.b16 %v1763
        %v1812 = vunpack.c.h.b16 %v1763
        %v1813 = vunpack.c.l.b16 %v1764
        %v1814 = vunpack.c.h.b16 %v1764
        %v1815 = vpack.c.b16 %v1785, %v1783
        %v1816 = vpack.c.b16 %v1786, %v1784
        %v1817 = vpack.c.b16 %v1789, %v1787
        %v1818 = vpack.c.b16 %v1790, %v1788
        %v1819 = vpack.c.b16 %v1793, %v1791
        %v1820 = vpack.c.b16 %v1794, %v1792
        %v1821 = vpack.c.b16 %v1797, %v1795
        %v1822 = vpack.c.b16 %v1798, %v1796
        %v1823 = vpack.c.b16 %v1801, %v1799
        %v1824 = vpack.c.b16 %v1802, %v1800
        %v1825 = vpack.c.b16 %v1805, %v1803
        %v1826 = vpack.c.b16 %v1806, %v1804
        %v1827 = vpack.c.b16 %v1809, %v1807
        %v1828 = vpack.c.b16 %v1810, %v1808
        %v1829 = vpack.c.b16 %v1813, %v1811
        %v1830 = vpack.c.b16 %v1814, %v1812
        %1847 = vmatprep.subr.bf16.mxu0 %v1816
        %1848 = vmatpush1.bf16.xpose.msra.mxu0 %v1815
        %1849 = vmatprep.subr.bf16.mxu0 %v1818
        %1850 = vmatpush1.bf16.xpose.msra.mxu0 %v1817
        %1851 = vmatprep.subr.bf16.mxu0 %v1820
        %1852 = vmatpush1.bf16.xpose.msra.mxu0 %v1819
        %1853 = vmatprep.subr.bf16.mxu0 %v1822
        %1854 = vmatpush1.bf16.xpose.msra.mxu0 %v1821
        %1855 = vmatprep.subr.bf16.mxu0 %v1824
        %1856 = vmatpush1.bf16.xpose.msra.mxu0 %v1823
        %1857 = vmatprep.subr.bf16.mxu0 %v1826
        %1858 = vmatpush1.bf16.xpose.msra.mxu0 %v1825
        %1859 = vmatprep.subr.bf16.mxu0 %v1828
        %1860 = vmatpush1.bf16.xpose.msra.mxu0 %v1827
        %1861 = vmatprep.subr.bf16.mxu0 %v1830
        %1862 = vmatpush1.bf16.xpose.msra.mxu0 %v1829
        %1863 = vmatprep.subr.bf16.mxu0 0
        %1864 = vmatpush1.bf16.xpose.msra.mxu0 0
        %1865 = vmatprep.subr.bf16.mxu0 0
        %1866 = vmatpush1.bf16.xpose.msra.mxu0 0
        %1867 = vmatprep.subr.bf16.mxu0 0
        %1868 = vmatpush1.bf16.xpose.msra.mxu0 0
        %1869 = vmatprep.subr.bf16.mxu0 0
        %1870 = vmatpush1.bf16.xpose.msra.mxu0 0
        %1871 = vmatprep.subr.bf16.mxu0 0
        %1872 = vmatpush1.bf16.xpose.msra.mxu0 0
        %1873 = vmatprep.subr.bf16.mxu0 0
        %1874 = vmatpush1.bf16.xpose.msra.mxu0 0
        %1875 = vmatprep.subr.bf16.mxu0 0
        %1876 = vmatpush1.bf16.xpose.msra.mxu0 0
        %1877 = vmatprep.subr.bf16.mxu0 0
        %1878 = vmatpush1.bf16.xpose.msra.mxu0 0
        %1879 = vmatprep.mubr.bf16.mxu0 %v1766
        %1880 = vmatmul.mubr.bf16.gmra.mrb[0].mxu0 %v1765
        %v1881 = vpop.f32.mrb[0].mxu0
        %v1882 = vadd.f32 0.0, %v1881
        %v1883 = vpop.f32.mrb[0].mxu0
        %v1884 = vpop.f32.mrb[0].mxu0
        %v1885 = vadd.f32 0.0, %v1884
        %v1886 = vpop.f32.mrb[0].mxu0
        %1887 = vdwg.mxu0
        %1888 = vst [vmem:[#allocation2] sm:$0xff] %v1882
        %1889 = vst [vmem:[#allocation2 + $0x8] sm:$0xff] %v1885
        %p1890 = scmp.eq.s32.totalorder %s23, 1
        // Predicated region
        $region69: #{llama_forward.1} parent=63 // pred_check
          %p1891 = pneg %p1890
        $region70: #{llama_forward.1} parent=63 // pred_check_branch
          %1893 = sbr.rel (%p1891) target = $region72
        $region71: #{llama_forward.1} parent=63 // pred_region
          %v1894 = vadd.f32 %v1882, %v1343
          %v1895 = vadd.f32 %v1885, %v1346
          %v1896 = vld [vmem:[%s10] sm:$0x1]
          %v1897 = vmul.f32 %v1894, %v1894
          %v1898 = vmul.f32 %v1895, %v1895
          %1899 = vadd.xlane.f32.xlu0 %v1897
          %v1900 = vpop.xlane.xlu0 %1899
          %1901 = vadd.xlane.f32.xlu0 %v1898
          %v1902 = vpop.xlane.xlu0 %1901
          %v1903 = vmul.f32 %v1900, %v485
          %v1904 = vmul.f32 %v1902, %v485
          %v1905 = vadd.f32 %v1903, 1e-06
          %v1906 = vadd.f32 %v1904, 1e-06
          %v1907 = vrsqrt.pop %v1905
          %v1908 = vrsqrt.pop %v1906
          %v1909 = vmul.f32 %v1894, %v1907
          %v1910 = vmul.f32 %v1895, %v1908
          %v1912 = vlaneseq
          %v1913 = vshrl.u32 %v1912, 7
          %v1914 = vsub.s32 0, %v1913
          %v1915 = vrot.slane %v1896, %v1914
          %v1917 = vmul.f32 %v1909, %v1915
          %v1918 = vmul.f32 %v1910, %v1915
          %1919 = vst [vmem:[#allocation4] sm:$0xff] %v1917
          %1920 = vst [vmem:[#allocation4 + $0x8] sm:$0xff] %v1918
        $region72: #{llama_forward.1} parent=63 // pred_fallthru
          _
        // Predicated region
        $region73: #{llama_forward.1} parent=63 // pred_check
          %p1921 = pneg %p297
        $region74: #{llama_forward.1} parent=63 // pred_check_branch
          %1923 = sbr.rel (%p1921) target = $region76
        $region75: #{llama_forward.1} parent=63 // pred_region
          %s1925 = ssub.s32 256, 256
          %1926 = vsyncadd [#allocation5], %s1925
          %s1927 = sshll.u32 [#allocation4], 4
          %s1928 = int_to_ptr.vmem [resolvable:$true] %s1927
          %1933 = dma.vmem_to_hbm [thread:$0]  %s1928, 256, %s11, [#allocation5], 128, 128, 8
        $region76: #{llama_forward.1} parent=63 // pred_fallthru
          _
        // Predicated region
        $region77: #{llama_forward.1} parent=63 // pred_check
          %p1934 = pneg %p297
        $region78: #{llama_forward.1} parent=63 // pred_check_branch
          %1936 = sbr.rel (%p1934) target = $region80
        $region79: #{llama_forward.1} parent=63 // pred_region
          %1937 = dma.done [#allocation5], 256
        $region80: #{llama_forward.1} parent=63 // pred_fallthru
          _
      $region64: #{llama_forward.1} parent=5 // pred_fallthru
        _
      %p1938 = scmp.le.s32.totalorder 2, %s18
      // Predicated region
      $region81: #{llama_forward.1} parent=5 // pred_check
        %p1939 = pneg %p1938
      $region82: #{llama_forward.1} parent=5 // pred_check_branch
        %1941 = sbr.rel (%p1939) target = $region84
      $region83: #{llama_forward.1} parent=5 // pred_region
        %s1942 = ssub.s32 %s18, 2
      $region84: #{llama_forward.1} parent=5 // pred_fallthru
        _
    $region6: #{llama_forward.1} parent=1 // loop_footer
      %s22 = sadd.s32 1, %s18
    $region7: #{llama_forward.1} parent=1 // loop_footer_branch
      %17 = sbr.rel target = $region3
    $region8: #{llama_forward.1} parent=1 // loop_exit
      _
    %1943 = vsyncpa [#allocation5], 1
    %s1944 = scalar_lea.sflag [#allocation5], 1
    %1945 = vsyncpa %s1944, 1

</llo_original>
